<compile_context>
chip_gen: v7x
topology: tpu7x:2x2x1
jax: 0.10.0
libtpu: 0.0.40
codegen_flags: <defaults>
</compile_context>

<pallas_src>
import numpy as np
import jax
import jax.numpy as jnp
from jax.experimental import pallas as pl
from jax.experimental.pallas import tpu as pltpu

F_ATTN = 12       # self.f in the PyTorch module
R_RED = 2         # self.r
LN_EPS = 1e-5     # nn.LayerNorm default eps


# ------------------------------ Pallas kernel ------------------------------

def spec_apnba_kernel(x_ref, sp_ref, wa_ref, aux_ref, o_ref):
    """One grid step owns `tb` complete batch elements.

    x_ref   : (1, tb, C*P)  VMEM  -- NCHW slab, (C,h,w) flattened on lanes
    sp_ref  : (2*(f*C+f)+C+1,) SMEM -- packed scalars:
              [wk (f*C) | bk (f) | wq (f*C) | bq (f) | wv_mean (C) | bv_mean (1)]
    wa_ref  : (f, C)  VMEM        -- fused conv41∘conv42 weight
    aux_ref : (3, C)  VMEM        -- [fused bias ; LN gamma ; LN beta]
    o_ref   : (1, tb, C) VMEM
    """
    f, C = wa_ref.shape
    tb = x_ref.shape[1]
    P = x_ref.shape[2] // C

    x = x_ref[0].astype(jnp.float32)                      # (tb, C*P)
    # Per-channel lane slices; offsets are multiples of P, so for P % 128 == 0
    # these are aligned column views (no relayout).
    xc = [x[:, c * P:(c + 1) * P] for c in range(C)]      # C x (tb, P)

    # ---- packed-scalar accessors (static SMEM offsets) ----
    o_wk = 0
    o_bk = o_wk + f * C
    o_wq = o_bk + f
    o_bq = o_wq + f * C
    o_wv = o_bq + f
    o_bv = o_wv + C
    wk = lambda i, c: sp_ref[o_wk + i * C + c]
    bk = lambda i: sp_ref[o_bk + i]
    wq = lambda i, c: sp_ref[o_wq + i * C + c]
    bq = lambda i: sp_ref[o_bq + i]
    wv = lambda c: sp_ref[o_wv + c]
    bv = sp_ref[o_bv]

    # ---- AvgPool2d((f,1)) of conv31(X) == affine map with averaged w/b ----
    v = bv + wv(0) * xc[0]
    for c in range(1, C):
        v = v + wv(c) * xc[c]                             # (tb, P)

    # ---- softmax over the pixel axis (lane reductions per row) ----
    m = jnp.max(v, axis=1, keepdims=True)
    e = jnp.exp(v - m)
    s = jnp.sum(e, axis=1, keepdims=True)
    attn = e * pl.reciprocal(s, approx=False)             # (tb, P)

    # ---- k, q projections + attention-weighted sum (C, f unrolled) ----
    # K = C = 4 is degenerate for the MXU; scalar(SMEM) * vector FMAs keep all
    # vector work lane-dense and avoid MXU push/pop latency per step.
    cols = []
    for i in range(f):
        k_i = bk(i) + wk(i, 0) * xc[0]
        q_i = bq(i) + wq(i, 0) * xc[0]
        for c in range(1, C):
            k_i = k_i + wk(i, c) * xc[c]
            q_i = q_i + wq(i, c) * xc[c]
        cols.append(jnp.sum(k_i * q_i * attn, axis=1, keepdims=True))  # (tb, 1)
    x41 = jnp.concatenate(cols, axis=1)                   # (tb, f)

    # ---- fused conv41∘conv42, LayerNorm(C), ReLU, Sigmoid ----
    aux = aux_ref[...]
    ba, gamma, beta = aux[0], aux[1], aux[2]              # (C,)
    z = jnp.dot(x41, wa_ref[...], preferred_element_type=jnp.float32) + ba
    mu = jnp.mean(z, axis=-1, keepdims=True)
    var = jnp.mean(jnp.square(z - mu), axis=-1, keepdims=True)
    zn = (z - mu) * jax.lax.rsqrt(var + LN_EPS) * gamma + beta
    zr = jnp.maximum(zn, 0.0)
    x42 = pl.reciprocal(1.0 + jnp.exp(-zr), approx=False)  # sigmoid, zr >= 0

    # ---- AdaptiveAvgPool2d((1,1))(x42 * X) == x42 * mean_p(X) ----
    xm = jnp.concatenate(
        [jnp.mean(xc[c], axis=1, keepdims=True) for c in range(C)], axis=1)
    o_ref[0] = (x42 * xm).astype(o_ref.dtype)             # (tb, C)


# ------------------------------ wrapper -------------------------------------

def _pick_tb(B, C, P, itemsize=4, target_bytes=512 * 1024):
    """Largest divisor of B whose (tb, C*P) block is ~target_bytes, while
    keeping >= 2 grid steps when possible (both v7x TensorCores get work)."""
    tb = max(1, min(B, target_bytes // max(1, C * P * itemsize)))
    while B % tb:
        tb -= 1
    if B // tb < 2 and B > 1:
        tb2 = tb // 2
        while tb2 >= 1 and B % tb2:
            tb2 -= 1
        tb = max(tb2, 1)
    return tb


def spec_apnba_forward(X, packed_params, tb=None):
    """X: (B, C, h, w) -> (B, C, 1, 1).  X may be f32 or bf16 (upcast in-kernel)."""
    B, C, h, w = X.shape
    P = h * w
    sp, wa, aux = packed_params

    if tb is None:
        tb = _pick_tb(B, C, P, X.dtype.itemsize)
    assert B % tb == 0, "tb must divide the batch size"
    G = B // tb

    # NCHW -> (G, tb, C*P): pure reshapes (no HBM transpose); the pixel axis
    # lands on lanes inside the kernel.
    xk = X.reshape(G, tb, C * P)

    out = pl.pallas_call(
        spec_apnba_kernel,
        out_shape=jax.ShapeDtypeStruct((G, tb, C), X.dtype),
        grid_spec=pltpu.PrefetchScalarGridSpec(
            num_scalar_prefetch=0,
            grid=(G,),
            in_specs=[
                pl.BlockSpec((1, tb, C * P), lambda i: (i, 0, 0)),       # X slab
                pl.BlockSpec(memory_space=pltpu.MemorySpace.SMEM),       # packed scalars
                pl.BlockSpec(wa.shape, lambda i: (0, 0)),                # fused conv41∘conv42
                pl.BlockSpec(aux.shape, lambda i: (0, 0)),               # bias/gamma/beta
            ],
            out_specs=pl.BlockSpec((1, tb, C), lambda i: (i, 0, 0)),
        ),
        compiler_params=pltpu.CompilerParams(
            dimension_semantics=("parallel",),
            vmem_limit_bytes=32 * 1024 * 1024,
        ),
    )(xk, sp, wa, aux)

    return out.reshape(B, C, 1, 1)


# ------------------------- parameter construction ---------------------------

def make_raw_params(C, key, f=F_ATTN, r=R_RED):
    ks = jax.random.split(key, 9)
    p = {
        'wk': 0.2 * jax.random.normal(ks[0], (f, C), jnp.float32),
        'bk': 0.1 * jax.random.normal(ks[1], (f,), jnp.float32),
        'wq': 0.2 * jax.random.normal(ks[2], (f, C), jnp.float32),
        'bq': 0.1 * jax.random.normal(ks[3], (f,), jnp.float32),
        'wv': 0.2 * jax.random.normal(ks[4], (f, C), jnp.float32),
        'bv': 0.1 * jax.random.normal(ks[5], (f,), jnp.float32),
        'w41': 0.2 * jax.random.normal(ks[6], (f // r, f), jnp.float32),
        'b41': 0.1 * jax.random.normal(ks[7], (f // r,), jnp.float32),
        'w42': 0.2 * jax.random.normal(ks[8], (C, f // r), jnp.float32),
        # deterministic spread so the LayerNorm variance is well-conditioned
        'b42': jnp.linspace(-0.3, 0.3, C, dtype=jnp.float32),
        'ln_g': 1.0 + 0.05 * jnp.arange(C, dtype=jnp.float32),
        'ln_b': 0.02 * jnp.arange(C, dtype=jnp.float32) - 0.03,
    }
    return p


def pack_params(p):
    """Fold conv31 + its f-channel average into one (C,)+scalar affine map,
    fuse conv41∘conv42, and pack everything into 3 operands.  Exact in exact
    arithmetic."""
    wv_mean = jnp.mean(p['wv'], axis=0)                       # (C,)
    bv_mean = jnp.mean(p['bv'])                               # ()
    sp = jnp.concatenate([
        p['wk'].reshape(-1), p['bk'],
        p['wq'].reshape(-1), p['bq'],
        wv_mean, bv_mean[None],
    ]).astype(jnp.float32)                                    # (2*(f*C+f)+C+1,)
    wa = p['w41'].T @ p['w42'].T                              # (f, C)
    ba = p['b41'] @ p['w42'].T + p['b42']                     # (C,)
    aux = jnp.stack([ba, p['ln_g'], p['ln_b']], axis=0)       # (3, C)
    return sp, wa, aux


# --------------------------- pure-JAX reference ------------------------------

def spec_apnba_reference(X, p):
    """Direct transcription of the PyTorch forward with unfused parameters.
    NOTE: relies on nn.Softmax() (implicit dim) resolving to dim=1 = h*w for
    the 4-D tensor at that point, which matches current PyTorch behavior."""
    B, C, h, w = X.shape
    Xp = X.reshape(B, C, h * w)                                    # (B, C, P)
    k = jnp.einsum('fc,bcp->bfp', p['wk'], Xp) + p['bk'][None, :, None]
    q = jnp.einsum('fc,bcp->bfp', p['wq'], Xp) + p['bq'][None, :, None]
    kq = k * q                                                     # (B, f, P)
    v = jnp.einsum('fc,bcp->bfp', p['wv'], Xp) + p['bv'][None, :, None]
    v_avg = jnp.mean(v, axis=1)                                    # AvgPool2d((f,1))
    attn = jax.nn.softmax(v_avg, axis=1)                           # softmax over h*w
    x41 = jnp.einsum('bfp,bp->bf', kq, attn)                       # (B, f)
    y = x41 @ p['w41'].T + p['b41']
    y = y @ p['w42'].T + p['b42']                                  # (B, C)
    mu = jnp.mean(y, axis=-1, keepdims=True)
    var = jnp.mean((y - mu) ** 2, axis=-1, keepdims=True)
    y = (y - mu) / jnp.sqrt(var + LN_EPS) * p['ln_g'] + p['ln_b']
    x42 = jax.nn.sigmoid(jnp.maximum(y, 0.0))                      # (B, C)
    out = x42 * jnp.mean(Xp, axis=2)                               # global pool
    return out.reshape(B, C, 1, 1)


# ----------------------------------- main -----------------------------------

if __name__ == "__main__":
    key = jax.random.PRNGKey(0)
    kx, kp = jax.random.split(key)

    C, h, w = 4, 16, 16
    raw = make_raw_params(C, kp)
    packed = pack_params(raw)

    # Small check (B=2 -> tb=1, grid=2) plus a multi-batch block check
    # (B=16 -> tb=8, grid=2) exercising the tb>1 path.
    for B in (2, 16):
        X = jax.random.normal(jax.random.fold_in(kx, B), (B, C, h, w),
                              jnp.float32)
        out = jax.block_until_ready(spec_apnba_forward(X, packed))
        ref = jax.block_until_ready(spec_apnba_reference(X, raw))
        np.testing.assert_allclose(np.asarray(out), np.asarray(ref),
                                   rtol=2e-4, atol=2e-5)
        assert out.shape == (B, C, 1, 1)

    print("KERNEL_OK")
</pallas_src>

<mosaic_0001>
module attributes {stable_mosaic.version = 11 : i64} {
  func.func @spec_apnba_kernel(%arg0: i32, %arg1: memref<1x1x1024xf32, #tpu.memory_space<vmem>>, %arg2: memref<125xf32, #tpu.memory_space<smem>>, %arg3: memref<12x4xf32, #tpu.memory_space<vmem>>, %arg4: memref<3x4xf32, #tpu.memory_space<vmem>>, %arg5: memref<1x1x4xf32, #tpu.memory_space<vmem>>) attributes {dimension_semantics = [#tpu.dimension_semantics<parallel>], iteration_bounds = array<i64: 2>, scalar_prefetch = 0 : i64, scratch_operands = 0 : i64, tpu.core_type = #tpu.core_type<tc>, window_params = [{transform_indices = @transform_0, window_bounds = array<i64: 1, 1, 1024>}, {transform_indices = @transform_1, window_bounds = array<i64: 125>}, {pipeline_mode = #tpu.pipeline_mode<synchronous>, transform_indices = @transform_2, window_bounds = array<i64: 12, 4>}, {pipeline_mode = #tpu.pipeline_mode<synchronous>, transform_indices = @transform_3, window_bounds = array<i64: 3, 4>}, {transform_indices = @transform_4, window_bounds = array<i64: 1, 1, 4>}]} {
    %c0 = arith.constant 0 : index
    %c0_0 = arith.constant 0 : index
    %c0_1 = arith.constant 0 : index
    %0 = vector.load %arg1[%c0, %c0_0, %c0_1] : memref<1x1x1024xf32, #tpu.memory_space<vmem>>, vector<1x1x1024xf32>
    %1 = vector.shape_cast %0 : vector<1x1x1024xf32> to vector<1x1024xf32>
    %2 = vector.extract_strided_slice %1 {offsets = [0, 0], sizes = [1, 256], strides = [1, 1]} : vector<1x1024xf32> to vector<1x256xf32>
    %3 = vector.extract_strided_slice %1 {offsets = [0, 256], sizes = [1, 256], strides = [1, 1]} : vector<1x1024xf32> to vector<1x256xf32>
    %4 = vector.extract_strided_slice %1 {offsets = [0, 512], sizes = [1, 256], strides = [1, 1]} : vector<1x1024xf32> to vector<1x256xf32>
    %5 = vector.extract_strided_slice %1 {offsets = [0, 768], sizes = [1, 256], strides = [1, 1]} : vector<1x1024xf32> to vector<1x256xf32>
    %c124 = arith.constant 124 : index
    %6 = memref.load %arg2[%c124] : memref<125xf32, #tpu.memory_space<smem>>
    %c120 = arith.constant 120 : index
    %7 = memref.load %arg2[%c120] : memref<125xf32, #tpu.memory_space<smem>>
    %8 = vector.broadcast %7 : f32 to vector<1x256xf32>
    %9 = arith.mulf %8, %2 : vector<1x256xf32>
    %10 = vector.broadcast %6 : f32 to vector<1x256xf32>
    %11 = arith.addf %10, %9 : vector<1x256xf32>
    %c121 = arith.constant 121 : index
    %12 = memref.load %arg2[%c121] : memref<125xf32, #tpu.memory_space<smem>>
    %13 = vector.broadcast %12 : f32 to vector<1x256xf32>
    %14 = arith.mulf %13, %3 : vector<1x256xf32>
    %15 = arith.addf %11, %14 : vector<1x256xf32>
    %c122 = arith.constant 122 : index
    %16 = memref.load %arg2[%c122] : memref<125xf32, #tpu.memory_space<smem>>
    %17 = vector.broadcast %16 : f32 to vector<1x256xf32>
    %18 = arith.mulf %17, %4 : vector<1x256xf32>
    %19 = arith.addf %15, %18 : vector<1x256xf32>
    %c123 = arith.constant 123 : index
    %20 = memref.load %arg2[%c123] : memref<125xf32, #tpu.memory_space<smem>>
    %21 = vector.broadcast %20 : f32 to vector<1x256xf32>
    %22 = arith.mulf %21, %5 : vector<1x256xf32>
    %23 = arith.addf %19, %22 : vector<1x256xf32>
    %cst = arith.constant dense<0xFF800000> : vector<1xf32>
    %24 = vector.multi_reduction <maximumf>, %23, %cst [1] : vector<1x256xf32> to vector<1xf32>
    %25 = vector.shape_cast %24 : vector<1xf32> to vector<1x1xf32>
    %26 = vector.broadcast %25 : vector<1x1xf32> to vector<1x256xf32>
    %27 = arith.subf %23, %26 : vector<1x256xf32>
    %28 = math.exp %27 : vector<1x256xf32>
    %cst_2 = arith.constant dense<0.000000e+00> : vector<1xf32>
    %29 = vector.multi_reduction <add>, %28, %cst_2 [1] : vector<1x256xf32> to vector<1xf32>
    %30 = vector.shape_cast %29 : vector<1xf32> to vector<1x1xf32>
    %31 = tpu.reciprocal %30 : vector<1x1xf32> -> vector<1x1xf32>
    %32 = vector.broadcast %31 : vector<1x1xf32> to vector<1x256xf32>
    %33 = arith.mulf %28, %32 : vector<1x256xf32>
    %c48 = arith.constant 48 : index
    %34 = memref.load %arg2[%c48] : memref<125xf32, #tpu.memory_space<smem>>
    %c0_3 = arith.constant 0 : index
    %35 = memref.load %arg2[%c0_3] : memref<125xf32, #tpu.memory_space<smem>>
    %36 = vector.broadcast %35 : f32 to vector<1x256xf32>
    %37 = arith.mulf %36, %2 : vector<1x256xf32>
    %38 = vector.broadcast %34 : f32 to vector<1x256xf32>
    %39 = arith.addf %38, %37 : vector<1x256xf32>
    %c108 = arith.constant 108 : index
    %40 = memref.load %arg2[%c108] : memref<125xf32, #tpu.memory_space<smem>>
    %c60 = arith.constant 60 : index
    %41 = memref.load %arg2[%c60] : memref<125xf32, #tpu.memory_space<smem>>
    %42 = vector.broadcast %41 : f32 to vector<1x256xf32>
    %43 = arith.mulf %42, %2 : vector<1x256xf32>
    %44 = vector.broadcast %40 : f32 to vector<1x256xf32>
    %45 = arith.addf %44, %43 : vector<1x256xf32>
    %c1 = arith.constant 1 : index
    %46 = memref.load %arg2[%c1] : memref<125xf32, #tpu.memory_space<smem>>
    %47 = vector.broadcast %46 : f32 to vector<1x256xf32>
    %48 = arith.mulf %47, %3 : vector<1x256xf32>
    %49 = arith.addf %39, %48 : vector<1x256xf32>
    %c61 = arith.constant 61 : index
    %50 = memref.load %arg2[%c61] : memref<125xf32, #tpu.memory_space<smem>>
    %51 = vector.broadcast %50 : f32 to vector<1x256xf32>
    %52 = arith.mulf %51, %3 : vector<1x256xf32>
    %53 = arith.addf %45, %52 : vector<1x256xf32>
    %c2 = arith.constant 2 : index
    %54 = memref.load %arg2[%c2] : memref<125xf32, #tpu.memory_space<smem>>
    %55 = vector.broadcast %54 : f32 to vector<1x256xf32>
    %56 = arith.mulf %55, %4 : vector<1x256xf32>
    %57 = arith.addf %49, %56 : vector<1x256xf32>
    %c62 = arith.constant 62 : index
    %58 = memref.load %arg2[%c62] : memref<125xf32, #tpu.memory_space<smem>>
    %59 = vector.broadcast %58 : f32 to vector<1x256xf32>
    %60 = arith.mulf %59, %4 : vector<1x256xf32>
    %61 = arith.addf %53, %60 : vector<1x256xf32>
    %c3 = arith.constant 3 : index
    %62 = memref.load %arg2[%c3] : memref<125xf32, #tpu.memory_space<smem>>
    %63 = vector.broadcast %62 : f32 to vector<1x256xf32>
    %64 = arith.mulf %63, %5 : vector<1x256xf32>
    %65 = arith.addf %57, %64 : vector<1x256xf32>
    %c63 = arith.constant 63 : index
    %66 = memref.load %arg2[%c63] : memref<125xf32, #tpu.memory_space<smem>>
    %67 = vector.broadcast %66 : f32 to vector<1x256xf32>
    %68 = arith.mulf %67, %5 : vector<1x256xf32>
    %69 = arith.addf %61, %68 : vector<1x256xf32>
    %70 = arith.mulf %65, %69 : vector<1x256xf32>
    %71 = arith.mulf %70, %33 : vector<1x256xf32>
    %cst_4 = arith.constant dense<0.000000e+00> : vector<1xf32>
    %72 = vector.multi_reduction <add>, %71, %cst_4 [1] : vector<1x256xf32> to vector<1xf32>
    %73 = vector.shape_cast %72 : vector<1xf32> to vector<1x1xf32>
    %c49 = arith.constant 49 : index
    %74 = memref.load %arg2[%c49] : memref<125xf32, #tpu.memory_space<smem>>
    %c4 = arith.constant 4 : index
    %75 = memref.load %arg2[%c4] : memref<125xf32, #tpu.memory_space<smem>>
    %76 = vector.broadcast %75 : f32 to vector<1x256xf32>
    %77 = arith.mulf %76, %2 : vector<1x256xf32>
    %78 = vector.broadcast %74 : f32 to vector<1x256xf32>
    %79 = arith.addf %78, %77 : vector<1x256xf32>
    %c109 = arith.constant 109 : index
    %80 = memref.load %arg2[%c109] : memref<125xf32, #tpu.memory_space<smem>>
    %c64 = arith.constant 64 : index
    %81 = memref.load %arg2[%c64] : memref<125xf32, #tpu.memory_space<smem>>
    %82 = vector.broadcast %81 : f32 to vector<1x256xf32>
    %83 = arith.mulf %82, %2 : vector<1x256xf32>
    %84 = vector.broadcast %80 : f32 to vector<1x256xf32>
    %85 = arith.addf %84, %83 : vector<1x256xf32>
    %c5 = arith.constant 5 : index
    %86 = memref.load %arg2[%c5] : memref<125xf32, #tpu.memory_space<smem>>
    %87 = vector.broadcast %86 : f32 to vector<1x256xf32>
    %88 = arith.mulf %87, %3 : vector<1x256xf32>
    %89 = arith.addf %79, %88 : vector<1x256xf32>
    %c65 = arith.constant 65 : index
    %90 = memref.load %arg2[%c65] : memref<125xf32, #tpu.memory_space<smem>>
    %91 = vector.broadcast %90 : f32 to vector<1x256xf32>
    %92 = arith.mulf %91, %3 : vector<1x256xf32>
    %93 = arith.addf %85, %92 : vector<1x256xf32>
    %c6 = arith.constant 6 : index
    %94 = memref.load %arg2[%c6] : memref<125xf32, #tpu.memory_space<smem>>
    %95 = vector.broadcast %94 : f32 to vector<1x256xf32>
    %96 = arith.mulf %95, %4 : vector<1x256xf32>
    %97 = arith.addf %89, %96 : vector<1x256xf32>
    %c66 = arith.constant 66 : index
    %98 = memref.load %arg2[%c66] : memref<125xf32, #tpu.memory_space<smem>>
    %99 = vector.broadcast %98 : f32 to vector<1x256xf32>
    %100 = arith.mulf %99, %4 : vector<1x256xf32>
    %101 = arith.addf %93, %100 : vector<1x256xf32>
    %c7 = arith.constant 7 : index
    %102 = memref.load %arg2[%c7] : memref<125xf32, #tpu.memory_space<smem>>
    %103 = vector.broadcast %102 : f32 to vector<1x256xf32>
    %104 = arith.mulf %103, %5 : vector<1x256xf32>
    %105 = arith.addf %97, %104 : vector<1x256xf32>
    %c67 = arith.constant 67 : index
    %106 = memref.load %arg2[%c67] : memref<125xf32, #tpu.memory_space<smem>>
    %107 = vector.broadcast %106 : f32 to vector<1x256xf32>
    %108 = arith.mulf %107, %5 : vector<1x256xf32>
    %109 = arith.addf %101, %108 : vector<1x256xf32>
    %110 = arith.mulf %105, %109 : vector<1x256xf32>
    %111 = arith.mulf %110, %33 : vector<1x256xf32>
    %cst_5 = arith.constant dense<0.000000e+00> : vector<1xf32>
    %112 = vector.multi_reduction <add>, %111, %cst_5 [1] : vector<1x256xf32> to vector<1xf32>
    %113 = vector.shape_cast %112 : vector<1xf32> to vector<1x1xf32>
    %c50 = arith.constant 50 : index
    %114 = memref.load %arg2[%c50] : memref<125xf32, #tpu.memory_space<smem>>
    %c8 = arith.constant 8 : index
    %115 = memref.load %arg2[%c8] : memref<125xf32, #tpu.memory_space<smem>>
    %116 = vector.broadcast %115 : f32 to vector<1x256xf32>
    %117 = arith.mulf %116, %2 : vector<1x256xf32>
    %118 = vector.broadcast %114 : f32 to vector<1x256xf32>
    %119 = arith.addf %118, %117 : vector<1x256xf32>
    %c110 = arith.constant 110 : index
    %120 = memref.load %arg2[%c110] : memref<125xf32, #tpu.memory_space<smem>>
    %c68 = arith.constant 68 : index
    %121 = memref.load %arg2[%c68] : memref<125xf32, #tpu.memory_space<smem>>
    %122 = vector.broadcast %121 : f32 to vector<1x256xf32>
    %123 = arith.mulf %122, %2 : vector<1x256xf32>
    %124 = vector.broadcast %120 : f32 to vector<1x256xf32>
    %125 = arith.addf %124, %123 : vector<1x256xf32>
    %c9 = arith.constant 9 : index
    %126 = memref.load %arg2[%c9] : memref<125xf32, #tpu.memory_space<smem>>
    %127 = vector.broadcast %126 : f32 to vector<1x256xf32>
    %128 = arith.mulf %127, %3 : vector<1x256xf32>
    %129 = arith.addf %119, %128 : vector<1x256xf32>
    %c69 = arith.constant 69 : index
    %130 = memref.load %arg2[%c69] : memref<125xf32, #tpu.memory_space<smem>>
    %131 = vector.broadcast %130 : f32 to vector<1x256xf32>
    %132 = arith.mulf %131, %3 : vector<1x256xf32>
    %133 = arith.addf %125, %132 : vector<1x256xf32>
    %c10 = arith.constant 10 : index
    %134 = memref.load %arg2[%c10] : memref<125xf32, #tpu.memory_space<smem>>
    %135 = vector.broadcast %134 : f32 to vector<1x256xf32>
    %136 = arith.mulf %135, %4 : vector<1x256xf32>
    %137 = arith.addf %129, %136 : vector<1x256xf32>
    %c70 = arith.constant 70 : index
    %138 = memref.load %arg2[%c70] : memref<125xf32, #tpu.memory_space<smem>>
    %139 = vector.broadcast %138 : f32 to vector<1x256xf32>
    %140 = arith.mulf %139, %4 : vector<1x256xf32>
    %141 = arith.addf %133, %140 : vector<1x256xf32>
    %c11 = arith.constant 11 : index
    %142 = memref.load %arg2[%c11] : memref<125xf32, #tpu.memory_space<smem>>
    %143 = vector.broadcast %142 : f32 to vector<1x256xf32>
    %144 = arith.mulf %143, %5 : vector<1x256xf32>
    %145 = arith.addf %137, %144 : vector<1x256xf32>
    %c71 = arith.constant 71 : index
    %146 = memref.load %arg2[%c71] : memref<125xf32, #tpu.memory_space<smem>>
    %147 = vector.broadcast %146 : f32 to vector<1x256xf32>
    %148 = arith.mulf %147, %5 : vector<1x256xf32>
    %149 = arith.addf %141, %148 : vector<1x256xf32>
    %150 = arith.mulf %145, %149 : vector<1x256xf32>
    %151 = arith.mulf %150, %33 : vector<1x256xf32>
    %cst_6 = arith.constant dense<0.000000e+00> : vector<1xf32>
    %152 = vector.multi_reduction <add>, %151, %cst_6 [1] : vector<1x256xf32> to vector<1xf32>
    %153 = vector.shape_cast %152 : vector<1xf32> to vector<1x1xf32>
    %c51 = arith.constant 51 : index
    %154 = memref.load %arg2[%c51] : memref<125xf32, #tpu.memory_space<smem>>
    %c12 = arith.constant 12 : index
    %155 = memref.load %arg2[%c12] : memref<125xf32, #tpu.memory_space<smem>>
    %156 = vector.broadcast %155 : f32 to vector<1x256xf32>
    %157 = arith.mulf %156, %2 : vector<1x256xf32>
    %158 = vector.broadcast %154 : f32 to vector<1x256xf32>
    %159 = arith.addf %158, %157 : vector<1x256xf32>
    %c111 = arith.constant 111 : index
    %160 = memref.load %arg2[%c111] : memref<125xf32, #tpu.memory_space<smem>>
    %c72 = arith.constant 72 : index
    %161 = memref.load %arg2[%c72] : memref<125xf32, #tpu.memory_space<smem>>
    %162 = vector.broadcast %161 : f32 to vector<1x256xf32>
    %163 = arith.mulf %162, %2 : vector<1x256xf32>
    %164 = vector.broadcast %160 : f32 to vector<1x256xf32>
    %165 = arith.addf %164, %163 : vector<1x256xf32>
    %c13 = arith.constant 13 : index
    %166 = memref.load %arg2[%c13] : memref<125xf32, #tpu.memory_space<smem>>
    %167 = vector.broadcast %166 : f32 to vector<1x256xf32>
    %168 = arith.mulf %167, %3 : vector<1x256xf32>
    %169 = arith.addf %159, %168 : vector<1x256xf32>
    %c73 = arith.constant 73 : index
    %170 = memref.load %arg2[%c73] : memref<125xf32, #tpu.memory_space<smem>>
    %171 = vector.broadcast %170 : f32 to vector<1x256xf32>
    %172 = arith.mulf %171, %3 : vector<1x256xf32>
    %173 = arith.addf %165, %172 : vector<1x256xf32>
    %c14 = arith.constant 14 : index
    %174 = memref.load %arg2[%c14] : memref<125xf32, #tpu.memory_space<smem>>
    %175 = vector.broadcast %174 : f32 to vector<1x256xf32>
    %176 = arith.mulf %175, %4 : vector<1x256xf32>
    %177 = arith.addf %169, %176 : vector<1x256xf32>
    %c74 = arith.constant 74 : index
    %178 = memref.load %arg2[%c74] : memref<125xf32, #tpu.memory_space<smem>>
    %179 = vector.broadcast %178 : f32 to vector<1x256xf32>
    %180 = arith.mulf %179, %4 : vector<1x256xf32>
    %181 = arith.addf %173, %180 : vector<1x256xf32>
    %c15 = arith.constant 15 : index
    %182 = memref.load %arg2[%c15] : memref<125xf32, #tpu.memory_space<smem>>
    %183 = vector.broadcast %182 : f32 to vector<1x256xf32>
    %184 = arith.mulf %183, %5 : vector<1x256xf32>
    %185 = arith.addf %177, %184 : vector<1x256xf32>
    %c75 = arith.constant 75 : index
    %186 = memref.load %arg2[%c75] : memref<125xf32, #tpu.memory_space<smem>>
    %187 = vector.broadcast %186 : f32 to vector<1x256xf32>
    %188 = arith.mulf %187, %5 : vector<1x256xf32>
    %189 = arith.addf %181, %188 : vector<1x256xf32>
    %190 = arith.mulf %185, %189 : vector<1x256xf32>
    %191 = arith.mulf %190, %33 : vector<1x256xf32>
    %cst_7 = arith.constant dense<0.000000e+00> : vector<1xf32>
    %192 = vector.multi_reduction <add>, %191, %cst_7 [1] : vector<1x256xf32> to vector<1xf32>
    %193 = vector.shape_cast %192 : vector<1xf32> to vector<1x1xf32>
    %c52 = arith.constant 52 : index
    %194 = memref.load %arg2[%c52] : memref<125xf32, #tpu.memory_space<smem>>
    %c16 = arith.constant 16 : index
    %195 = memref.load %arg2[%c16] : memref<125xf32, #tpu.memory_space<smem>>
    %196 = vector.broadcast %195 : f32 to vector<1x256xf32>
    %197 = arith.mulf %196, %2 : vector<1x256xf32>
    %198 = vector.broadcast %194 : f32 to vector<1x256xf32>
    %199 = arith.addf %198, %197 : vector<1x256xf32>
    %c112 = arith.constant 112 : index
    %200 = memref.load %arg2[%c112] : memref<125xf32, #tpu.memory_space<smem>>
    %c76 = arith.constant 76 : index
    %201 = memref.load %arg2[%c76] : memref<125xf32, #tpu.memory_space<smem>>
    %202 = vector.broadcast %201 : f32 to vector<1x256xf32>
    %203 = arith.mulf %202, %2 : vector<1x256xf32>
    %204 = vector.broadcast %200 : f32 to vector<1x256xf32>
    %205 = arith.addf %204, %203 : vector<1x256xf32>
    %c17 = arith.constant 17 : index
    %206 = memref.load %arg2[%c17] : memref<125xf32, #tpu.memory_space<smem>>
    %207 = vector.broadcast %206 : f32 to vector<1x256xf32>
    %208 = arith.mulf %207, %3 : vector<1x256xf32>
    %209 = arith.addf %199, %208 : vector<1x256xf32>
    %c77 = arith.constant 77 : index
    %210 = memref.load %arg2[%c77] : memref<125xf32, #tpu.memory_space<smem>>
    %211 = vector.broadcast %210 : f32 to vector<1x256xf32>
    %212 = arith.mulf %211, %3 : vector<1x256xf32>
    %213 = arith.addf %205, %212 : vector<1x256xf32>
    %c18 = arith.constant 18 : index
    %214 = memref.load %arg2[%c18] : memref<125xf32, #tpu.memory_space<smem>>
    %215 = vector.broadcast %214 : f32 to vector<1x256xf32>
    %216 = arith.mulf %215, %4 : vector<1x256xf32>
    %217 = arith.addf %209, %216 : vector<1x256xf32>
    %c78 = arith.constant 78 : index
    %218 = memref.load %arg2[%c78] : memref<125xf32, #tpu.memory_space<smem>>
    %219 = vector.broadcast %218 : f32 to vector<1x256xf32>
    %220 = arith.mulf %219, %4 : vector<1x256xf32>
    %221 = arith.addf %213, %220 : vector<1x256xf32>
    %c19 = arith.constant 19 : index
    %222 = memref.load %arg2[%c19] : memref<125xf32, #tpu.memory_space<smem>>
    %223 = vector.broadcast %222 : f32 to vector<1x256xf32>
    %224 = arith.mulf %223, %5 : vector<1x256xf32>
    %225 = arith.addf %217, %224 : vector<1x256xf32>
    %c79 = arith.constant 79 : index
    %226 = memref.load %arg2[%c79] : memref<125xf32, #tpu.memory_space<smem>>
    %227 = vector.broadcast %226 : f32 to vector<1x256xf32>
    %228 = arith.mulf %227, %5 : vector<1x256xf32>
    %229 = arith.addf %221, %228 : vector<1x256xf32>
    %230 = arith.mulf %225, %229 : vector<1x256xf32>
    %231 = arith.mulf %230, %33 : vector<1x256xf32>
    %cst_8 = arith.constant dense<0.000000e+00> : vector<1xf32>
    %232 = vector.multi_reduction <add>, %231, %cst_8 [1] : vector<1x256xf32> to vector<1xf32>
    %233 = vector.shape_cast %232 : vector<1xf32> to vector<1x1xf32>
    %c53 = arith.constant 53 : index
    %234 = memref.load %arg2[%c53] : memref<125xf32, #tpu.memory_space<smem>>
    %c20 = arith.constant 20 : index
    %235 = memref.load %arg2[%c20] : memref<125xf32, #tpu.memory_space<smem>>
    %236 = vector.broadcast %235 : f32 to vector<1x256xf32>
    %237 = arith.mulf %236, %2 : vector<1x256xf32>
    %238 = vector.broadcast %234 : f32 to vector<1x256xf32>
    %239 = arith.addf %238, %237 : vector<1x256xf32>
    %c113 = arith.constant 113 : index
    %240 = memref.load %arg2[%c113] : memref<125xf32, #tpu.memory_space<smem>>
    %c80 = arith.constant 80 : index
    %241 = memref.load %arg2[%c80] : memref<125xf32, #tpu.memory_space<smem>>
    %242 = vector.broadcast %241 : f32 to vector<1x256xf32>
    %243 = arith.mulf %242, %2 : vector<1x256xf32>
    %244 = vector.broadcast %240 : f32 to vector<1x256xf32>
    %245 = arith.addf %244, %243 : vector<1x256xf32>
    %c21 = arith.constant 21 : index
    %246 = memref.load %arg2[%c21] : memref<125xf32, #tpu.memory_space<smem>>
    %247 = vector.broadcast %246 : f32 to vector<1x256xf32>
    %248 = arith.mulf %247, %3 : vector<1x256xf32>
    %249 = arith.addf %239, %248 : vector<1x256xf32>
    %c81 = arith.constant 81 : index
    %250 = memref.load %arg2[%c81] : memref<125xf32, #tpu.memory_space<smem>>
    %251 = vector.broadcast %250 : f32 to vector<1x256xf32>
    %252 = arith.mulf %251, %3 : vector<1x256xf32>
    %253 = arith.addf %245, %252 : vector<1x256xf32>
    %c22 = arith.constant 22 : index
    %254 = memref.load %arg2[%c22] : memref<125xf32, #tpu.memory_space<smem>>
    %255 = vector.broadcast %254 : f32 to vector<1x256xf32>
    %256 = arith.mulf %255, %4 : vector<1x256xf32>
    %257 = arith.addf %249, %256 : vector<1x256xf32>
    %c82 = arith.constant 82 : index
    %258 = memref.load %arg2[%c82] : memref<125xf32, #tpu.memory_space<smem>>
    %259 = vector.broadcast %258 : f32 to vector<1x256xf32>
    %260 = arith.mulf %259, %4 : vector<1x256xf32>
    %261 = arith.addf %253, %260 : vector<1x256xf32>
    %c23 = arith.constant 23 : index
    %262 = memref.load %arg2[%c23] : memref<125xf32, #tpu.memory_space<smem>>
    %263 = vector.broadcast %262 : f32 to vector<1x256xf32>
    %264 = arith.mulf %263, %5 : vector<1x256xf32>
    %265 = arith.addf %257, %264 : vector<1x256xf32>
    %c83 = arith.constant 83 : index
    %266 = memref.load %arg2[%c83] : memref<125xf32, #tpu.memory_space<smem>>
    %267 = vector.broadcast %266 : f32 to vector<1x256xf32>
    %268 = arith.mulf %267, %5 : vector<1x256xf32>
    %269 = arith.addf %261, %268 : vector<1x256xf32>
    %270 = arith.mulf %265, %269 : vector<1x256xf32>
    %271 = arith.mulf %270, %33 : vector<1x256xf32>
    %cst_9 = arith.constant dense<0.000000e+00> : vector<1xf32>
    %272 = vector.multi_reduction <add>, %271, %cst_9 [1] : vector<1x256xf32> to vector<1xf32>
    %273 = vector.shape_cast %272 : vector<1xf32> to vector<1x1xf32>
    %c54 = arith.constant 54 : index
    %274 = memref.load %arg2[%c54] : memref<125xf32, #tpu.memory_space<smem>>
    %c24 = arith.constant 24 : index
    %275 = memref.load %arg2[%c24] : memref<125xf32, #tpu.memory_space<smem>>
    %276 = vector.broadcast %275 : f32 to vector<1x256xf32>
    %277 = arith.mulf %276, %2 : vector<1x256xf32>
    %278 = vector.broadcast %274 : f32 to vector<1x256xf32>
    %279 = arith.addf %278, %277 : vector<1x256xf32>
    %c114 = arith.constant 114 : index
    %280 = memref.load %arg2[%c114] : memref<125xf32, #tpu.memory_space<smem>>
    %c84 = arith.constant 84 : index
    %281 = memref.load %arg2[%c84] : memref<125xf32, #tpu.memory_space<smem>>
    %282 = vector.broadcast %281 : f32 to vector<1x256xf32>
    %283 = arith.mulf %282, %2 : vector<1x256xf32>
    %284 = vector.broadcast %280 : f32 to vector<1x256xf32>
    %285 = arith.addf %284, %283 : vector<1x256xf32>
    %c25 = arith.constant 25 : index
    %286 = memref.load %arg2[%c25] : memref<125xf32, #tpu.memory_space<smem>>
    %287 = vector.broadcast %286 : f32 to vector<1x256xf32>
    %288 = arith.mulf %287, %3 : vector<1x256xf32>
    %289 = arith.addf %279, %288 : vector<1x256xf32>
    %c85 = arith.constant 85 : index
    %290 = memref.load %arg2[%c85] : memref<125xf32, #tpu.memory_space<smem>>
    %291 = vector.broadcast %290 : f32 to vector<1x256xf32>
    %292 = arith.mulf %291, %3 : vector<1x256xf32>
    %293 = arith.addf %285, %292 : vector<1x256xf32>
    %c26 = arith.constant 26 : index
    %294 = memref.load %arg2[%c26] : memref<125xf32, #tpu.memory_space<smem>>
    %295 = vector.broadcast %294 : f32 to vector<1x256xf32>
    %296 = arith.mulf %295, %4 : vector<1x256xf32>
    %297 = arith.addf %289, %296 : vector<1x256xf32>
    %c86 = arith.constant 86 : index
    %298 = memref.load %arg2[%c86] : memref<125xf32, #tpu.memory_space<smem>>
    %299 = vector.broadcast %298 : f32 to vector<1x256xf32>
    %300 = arith.mulf %299, %4 : vector<1x256xf32>
    %301 = arith.addf %293, %300 : vector<1x256xf32>
    %c27 = arith.constant 27 : index
    %302 = memref.load %arg2[%c27] : memref<125xf32, #tpu.memory_space<smem>>
    %303 = vector.broadcast %302 : f32 to vector<1x256xf32>
    %304 = arith.mulf %303, %5 : vector<1x256xf32>
    %305 = arith.addf %297, %304 : vector<1x256xf32>
    %c87 = arith.constant 87 : index
    %306 = memref.load %arg2[%c87] : memref<125xf32, #tpu.memory_space<smem>>
    %307 = vector.broadcast %306 : f32 to vector<1x256xf32>
    %308 = arith.mulf %307, %5 : vector<1x256xf32>
    %309 = arith.addf %301, %308 : vector<1x256xf32>
    %310 = arith.mulf %305, %309 : vector<1x256xf32>
    %311 = arith.mulf %310, %33 : vector<1x256xf32>
    %cst_10 = arith.constant dense<0.000000e+00> : vector<1xf32>
    %312 = vector.multi_reduction <add>, %311, %cst_10 [1] : vector<1x256xf32> to vector<1xf32>
    %313 = vector.shape_cast %312 : vector<1xf32> to vector<1x1xf32>
    %c55 = arith.constant 55 : index
    %314 = memref.load %arg2[%c55] : memref<125xf32, #tpu.memory_space<smem>>
    %c28 = arith.constant 28 : index
    %315 = memref.load %arg2[%c28] : memref<125xf32, #tpu.memory_space<smem>>
    %316 = vector.broadcast %315 : f32 to vector<1x256xf32>
    %317 = arith.mulf %316, %2 : vector<1x256xf32>
    %318 = vector.broadcast %314 : f32 to vector<1x256xf32>
    %319 = arith.addf %318, %317 : vector<1x256xf32>
    %c115 = arith.constant 115 : index
    %320 = memref.load %arg2[%c115] : memref<125xf32, #tpu.memory_space<smem>>
    %c88 = arith.constant 88 : index
    %321 = memref.load %arg2[%c88] : memref<125xf32, #tpu.memory_space<smem>>
    %322 = vector.broadcast %321 : f32 to vector<1x256xf32>
    %323 = arith.mulf %322, %2 : vector<1x256xf32>
    %324 = vector.broadcast %320 : f32 to vector<1x256xf32>
    %325 = arith.addf %324, %323 : vector<1x256xf32>
    %c29 = arith.constant 29 : index
    %326 = memref.load %arg2[%c29] : memref<125xf32, #tpu.memory_space<smem>>
    %327 = vector.broadcast %326 : f32 to vector<1x256xf32>
    %328 = arith.mulf %327, %3 : vector<1x256xf32>
    %329 = arith.addf %319, %328 : vector<1x256xf32>
    %c89 = arith.constant 89 : index
    %330 = memref.load %arg2[%c89] : memref<125xf32, #tpu.memory_space<smem>>
    %331 = vector.broadcast %330 : f32 to vector<1x256xf32>
    %332 = arith.mulf %331, %3 : vector<1x256xf32>
    %333 = arith.addf %325, %332 : vector<1x256xf32>
    %c30 = arith.constant 30 : index
    %334 = memref.load %arg2[%c30] : memref<125xf32, #tpu.memory_space<smem>>
    %335 = vector.broadcast %334 : f32 to vector<1x256xf32>
    %336 = arith.mulf %335, %4 : vector<1x256xf32>
    %337 = arith.addf %329, %336 : vector<1x256xf32>
    %c90 = arith.constant 90 : index
    %338 = memref.load %arg2[%c90] : memref<125xf32, #tpu.memory_space<smem>>
    %339 = vector.broadcast %338 : f32 to vector<1x256xf32>
    %340 = arith.mulf %339, %4 : vector<1x256xf32>
    %341 = arith.addf %333, %340 : vector<1x256xf32>
    %c31 = arith.constant 31 : index
    %342 = memref.load %arg2[%c31] : memref<125xf32, #tpu.memory_space<smem>>
    %343 = vector.broadcast %342 : f32 to vector<1x256xf32>
    %344 = arith.mulf %343, %5 : vector<1x256xf32>
    %345 = arith.addf %337, %344 : vector<1x256xf32>
    %c91 = arith.constant 91 : index
    %346 = memref.load %arg2[%c91] : memref<125xf32, #tpu.memory_space<smem>>
    %347 = vector.broadcast %346 : f32 to vector<1x256xf32>
    %348 = arith.mulf %347, %5 : vector<1x256xf32>
    %349 = arith.addf %341, %348 : vector<1x256xf32>
    %350 = arith.mulf %345, %349 : vector<1x256xf32>
    %351 = arith.mulf %350, %33 : vector<1x256xf32>
    %cst_11 = arith.constant dense<0.000000e+00> : vector<1xf32>
    %352 = vector.multi_reduction <add>, %351, %cst_11 [1] : vector<1x256xf32> to vector<1xf32>
    %353 = vector.shape_cast %352 : vector<1xf32> to vector<1x1xf32>
    %c56 = arith.constant 56 : index
    %354 = memref.load %arg2[%c56] : memref<125xf32, #tpu.memory_space<smem>>
    %c32 = arith.constant 32 : index
    %355 = memref.load %arg2[%c32] : memref<125xf32, #tpu.memory_space<smem>>
    %356 = vector.broadcast %355 : f32 to vector<1x256xf32>
    %357 = arith.mulf %356, %2 : vector<1x256xf32>
    %358 = vector.broadcast %354 : f32 to vector<1x256xf32>
    %359 = arith.addf %358, %357 : vector<1x256xf32>
    %c116 = arith.constant 116 : index
    %360 = memref.load %arg2[%c116] : memref<125xf32, #tpu.memory_space<smem>>
    %c92 = arith.constant 92 : index
    %361 = memref.load %arg2[%c92] : memref<125xf32, #tpu.memory_space<smem>>
    %362 = vector.broadcast %361 : f32 to vector<1x256xf32>
    %363 = arith.mulf %362, %2 : vector<1x256xf32>
    %364 = vector.broadcast %360 : f32 to vector<1x256xf32>
    %365 = arith.addf %364, %363 : vector<1x256xf32>
    %c33 = arith.constant 33 : index
    %366 = memref.load %arg2[%c33] : memref<125xf32, #tpu.memory_space<smem>>
    %367 = vector.broadcast %366 : f32 to vector<1x256xf32>
    %368 = arith.mulf %367, %3 : vector<1x256xf32>
    %369 = arith.addf %359, %368 : vector<1x256xf32>
    %c93 = arith.constant 93 : index
    %370 = memref.load %arg2[%c93] : memref<125xf32, #tpu.memory_space<smem>>
    %371 = vector.broadcast %370 : f32 to vector<1x256xf32>
    %372 = arith.mulf %371, %3 : vector<1x256xf32>
    %373 = arith.addf %365, %372 : vector<1x256xf32>
    %c34 = arith.constant 34 : index
    %374 = memref.load %arg2[%c34] : memref<125xf32, #tpu.memory_space<smem>>
    %375 = vector.broadcast %374 : f32 to vector<1x256xf32>
    %376 = arith.mulf %375, %4 : vector<1x256xf32>
    %377 = arith.addf %369, %376 : vector<1x256xf32>
    %c94 = arith.constant 94 : index
    %378 = memref.load %arg2[%c94] : memref<125xf32, #tpu.memory_space<smem>>
    %379 = vector.broadcast %378 : f32 to vector<1x256xf32>
    %380 = arith.mulf %379, %4 : vector<1x256xf32>
    %381 = arith.addf %373, %380 : vector<1x256xf32>
    %c35 = arith.constant 35 : index
    %382 = memref.load %arg2[%c35] : memref<125xf32, #tpu.memory_space<smem>>
    %383 = vector.broadcast %382 : f32 to vector<1x256xf32>
    %384 = arith.mulf %383, %5 : vector<1x256xf32>
    %385 = arith.addf %377, %384 : vector<1x256xf32>
    %c95 = arith.constant 95 : index
    %386 = memref.load %arg2[%c95] : memref<125xf32, #tpu.memory_space<smem>>
    %387 = vector.broadcast %386 : f32 to vector<1x256xf32>
    %388 = arith.mulf %387, %5 : vector<1x256xf32>
    %389 = arith.addf %381, %388 : vector<1x256xf32>
    %390 = arith.mulf %385, %389 : vector<1x256xf32>
    %391 = arith.mulf %390, %33 : vector<1x256xf32>
    %cst_12 = arith.constant dense<0.000000e+00> : vector<1xf32>
    %392 = vector.multi_reduction <add>, %391, %cst_12 [1] : vector<1x256xf32> to vector<1xf32>
    %393 = vector.shape_cast %392 : vector<1xf32> to vector<1x1xf32>
    %c57 = arith.constant 57 : index
    %394 = memref.load %arg2[%c57] : memref<125xf32, #tpu.memory_space<smem>>
    %c36 = arith.constant 36 : index
    %395 = memref.load %arg2[%c36] : memref<125xf32, #tpu.memory_space<smem>>
    %396 = vector.broadcast %395 : f32 to vector<1x256xf32>
    %397 = arith.mulf %396, %2 : vector<1x256xf32>
    %398 = vector.broadcast %394 : f32 to vector<1x256xf32>
    %399 = arith.addf %398, %397 : vector<1x256xf32>
    %c117 = arith.constant 117 : index
    %400 = memref.load %arg2[%c117] : memref<125xf32, #tpu.memory_space<smem>>
    %c96 = arith.constant 96 : index
    %401 = memref.load %arg2[%c96] : memref<125xf32, #tpu.memory_space<smem>>
    %402 = vector.broadcast %401 : f32 to vector<1x256xf32>
    %403 = arith.mulf %402, %2 : vector<1x256xf32>
    %404 = vector.broadcast %400 : f32 to vector<1x256xf32>
    %405 = arith.addf %404, %403 : vector<1x256xf32>
    %c37 = arith.constant 37 : index
    %406 = memref.load %arg2[%c37] : memref<125xf32, #tpu.memory_space<smem>>
    %407 = vector.broadcast %406 : f32 to vector<1x256xf32>
    %408 = arith.mulf %407, %3 : vector<1x256xf32>
    %409 = arith.addf %399, %408 : vector<1x256xf32>
    %c97 = arith.constant 97 : index
    %410 = memref.load %arg2[%c97] : memref<125xf32, #tpu.memory_space<smem>>
    %411 = vector.broadcast %410 : f32 to vector<1x256xf32>
    %412 = arith.mulf %411, %3 : vector<1x256xf32>
    %413 = arith.addf %405, %412 : vector<1x256xf32>
    %c38 = arith.constant 38 : index
    %414 = memref.load %arg2[%c38] : memref<125xf32, #tpu.memory_space<smem>>
    %415 = vector.broadcast %414 : f32 to vector<1x256xf32>
    %416 = arith.mulf %415, %4 : vector<1x256xf32>
    %417 = arith.addf %409, %416 : vector<1x256xf32>
    %c98 = arith.constant 98 : index
    %418 = memref.load %arg2[%c98] : memref<125xf32, #tpu.memory_space<smem>>
    %419 = vector.broadcast %418 : f32 to vector<1x256xf32>
    %420 = arith.mulf %419, %4 : vector<1x256xf32>
    %421 = arith.addf %413, %420 : vector<1x256xf32>
    %c39 = arith.constant 39 : index
    %422 = memref.load %arg2[%c39] : memref<125xf32, #tpu.memory_space<smem>>
    %423 = vector.broadcast %422 : f32 to vector<1x256xf32>
    %424 = arith.mulf %423, %5 : vector<1x256xf32>
    %425 = arith.addf %417, %424 : vector<1x256xf32>
    %c99 = arith.constant 99 : index
    %426 = memref.load %arg2[%c99] : memref<125xf32, #tpu.memory_space<smem>>
    %427 = vector.broadcast %426 : f32 to vector<1x256xf32>
    %428 = arith.mulf %427, %5 : vector<1x256xf32>
    %429 = arith.addf %421, %428 : vector<1x256xf32>
    %430 = arith.mulf %425, %429 : vector<1x256xf32>
    %431 = arith.mulf %430, %33 : vector<1x256xf32>
    %cst_13 = arith.constant dense<0.000000e+00> : vector<1xf32>
    %432 = vector.multi_reduction <add>, %431, %cst_13 [1] : vector<1x256xf32> to vector<1xf32>
    %433 = vector.shape_cast %432 : vector<1xf32> to vector<1x1xf32>
    %c58 = arith.constant 58 : index
    %434 = memref.load %arg2[%c58] : memref<125xf32, #tpu.memory_space<smem>>
    %c40 = arith.constant 40 : index
    %435 = memref.load %arg2[%c40] : memref<125xf32, #tpu.memory_space<smem>>
    %436 = vector.broadcast %435 : f32 to vector<1x256xf32>
    %437 = arith.mulf %436, %2 : vector<1x256xf32>
    %438 = vector.broadcast %434 : f32 to vector<1x256xf32>
    %439 = arith.addf %438, %437 : vector<1x256xf32>
    %c118 = arith.constant 118 : index
    %440 = memref.load %arg2[%c118] : memref<125xf32, #tpu.memory_space<smem>>
    %c100 = arith.constant 100 : index
    %441 = memref.load %arg2[%c100] : memref<125xf32, #tpu.memory_space<smem>>
    %442 = vector.broadcast %441 : f32 to vector<1x256xf32>
    %443 = arith.mulf %442, %2 : vector<1x256xf32>
    %444 = vector.broadcast %440 : f32 to vector<1x256xf32>
    %445 = arith.addf %444, %443 : vector<1x256xf32>
    %c41 = arith.constant 41 : index
    %446 = memref.load %arg2[%c41] : memref<125xf32, #tpu.memory_space<smem>>
    %447 = vector.broadcast %446 : f32 to vector<1x256xf32>
    %448 = arith.mulf %447, %3 : vector<1x256xf32>
    %449 = arith.addf %439, %448 : vector<1x256xf32>
    %c101 = arith.constant 101 : index
    %450 = memref.load %arg2[%c101] : memref<125xf32, #tpu.memory_space<smem>>
    %451 = vector.broadcast %450 : f32 to vector<1x256xf32>
    %452 = arith.mulf %451, %3 : vector<1x256xf32>
    %453 = arith.addf %445, %452 : vector<1x256xf32>
    %c42 = arith.constant 42 : index
    %454 = memref.load %arg2[%c42] : memref<125xf32, #tpu.memory_space<smem>>
    %455 = vector.broadcast %454 : f32 to vector<1x256xf32>
    %456 = arith.mulf %455, %4 : vector<1x256xf32>
    %457 = arith.addf %449, %456 : vector<1x256xf32>
    %c102 = arith.constant 102 : index
    %458 = memref.load %arg2[%c102] : memref<125xf32, #tpu.memory_space<smem>>
    %459 = vector.broadcast %458 : f32 to vector<1x256xf32>
    %460 = arith.mulf %459, %4 : vector<1x256xf32>
    %461 = arith.addf %453, %460 : vector<1x256xf32>
    %c43 = arith.constant 43 : index
    %462 = memref.load %arg2[%c43] : memref<125xf32, #tpu.memory_space<smem>>
    %463 = vector.broadcast %462 : f32 to vector<1x256xf32>
    %464 = arith.mulf %463, %5 : vector<1x256xf32>
    %465 = arith.addf %457, %464 : vector<1x256xf32>
    %c103 = arith.constant 103 : index
    %466 = memref.load %arg2[%c103] : memref<125xf32, #tpu.memory_space<smem>>
    %467 = vector.broadcast %466 : f32 to vector<1x256xf32>
    %468 = arith.mulf %467, %5 : vector<1x256xf32>
    %469 = arith.addf %461, %468 : vector<1x256xf32>
    %470 = arith.mulf %465, %469 : vector<1x256xf32>
    %471 = arith.mulf %470, %33 : vector<1x256xf32>
    %cst_14 = arith.constant dense<0.000000e+00> : vector<1xf32>
    %472 = vector.multi_reduction <add>, %471, %cst_14 [1] : vector<1x256xf32> to vector<1xf32>
    %473 = vector.shape_cast %472 : vector<1xf32> to vector<1x1xf32>
    %c59 = arith.constant 59 : index
    %474 = memref.load %arg2[%c59] : memref<125xf32, #tpu.memory_space<smem>>
    %c44 = arith.constant 44 : index
    %475 = memref.load %arg2[%c44] : memref<125xf32, #tpu.memory_space<smem>>
    %476 = vector.broadcast %475 : f32 to vector<1x256xf32>
    %477 = arith.mulf %476, %2 : vector<1x256xf32>
    %478 = vector.broadcast %474 : f32 to vector<1x256xf32>
    %479 = arith.addf %478, %477 : vector<1x256xf32>
    %c119 = arith.constant 119 : index
    %480 = memref.load %arg2[%c119] : memref<125xf32, #tpu.memory_space<smem>>
    %c104 = arith.constant 104 : index
    %481 = memref.load %arg2[%c104] : memref<125xf32, #tpu.memory_space<smem>>
    %482 = vector.broadcast %481 : f32 to vector<1x256xf32>
    %483 = arith.mulf %482, %2 : vector<1x256xf32>
    %484 = vector.broadcast %480 : f32 to vector<1x256xf32>
    %485 = arith.addf %484, %483 : vector<1x256xf32>
    %c45 = arith.constant 45 : index
    %486 = memref.load %arg2[%c45] : memref<125xf32, #tpu.memory_space<smem>>
    %487 = vector.broadcast %486 : f32 to vector<1x256xf32>
    %488 = arith.mulf %487, %3 : vector<1x256xf32>
    %489 = arith.addf %479, %488 : vector<1x256xf32>
    %c105 = arith.constant 105 : index
    %490 = memref.load %arg2[%c105] : memref<125xf32, #tpu.memory_space<smem>>
    %491 = vector.broadcast %490 : f32 to vector<1x256xf32>
    %492 = arith.mulf %491, %3 : vector<1x256xf32>
    %493 = arith.addf %485, %492 : vector<1x256xf32>
    %c46 = arith.constant 46 : index
    %494 = memref.load %arg2[%c46] : memref<125xf32, #tpu.memory_space<smem>>
    %495 = vector.broadcast %494 : f32 to vector<1x256xf32>
    %496 = arith.mulf %495, %4 : vector<1x256xf32>
    %497 = arith.addf %489, %496 : vector<1x256xf32>
    %c106 = arith.constant 106 : index
    %498 = memref.load %arg2[%c106] : memref<125xf32, #tpu.memory_space<smem>>
    %499 = vector.broadcast %498 : f32 to vector<1x256xf32>
    %500 = arith.mulf %499, %4 : vector<1x256xf32>
    %501 = arith.addf %493, %500 : vector<1x256xf32>
    %c47 = arith.constant 47 : index
    %502 = memref.load %arg2[%c47] : memref<125xf32, #tpu.memory_space<smem>>
    %503 = vector.broadcast %502 : f32 to vector<1x256xf32>
    %504 = arith.mulf %503, %5 : vector<1x256xf32>
    %505 = arith.addf %497, %504 : vector<1x256xf32>
    %c107 = arith.constant 107 : index
    %506 = memref.load %arg2[%c107] : memref<125xf32, #tpu.memory_space<smem>>
    %507 = vector.broadcast %506 : f32 to vector<1x256xf32>
    %508 = arith.mulf %507, %5 : vector<1x256xf32>
    %509 = arith.addf %501, %508 : vector<1x256xf32>
    %510 = arith.mulf %505, %509 : vector<1x256xf32>
    %511 = arith.mulf %510, %33 : vector<1x256xf32>
    %cst_15 = arith.constant dense<0.000000e+00> : vector<1xf32>
    %512 = vector.multi_reduction <add>, %511, %cst_15 [1] : vector<1x256xf32> to vector<1xf32>
    %513 = vector.shape_cast %512 : vector<1xf32> to vector<1x1xf32>
    %514 = tpu.concatenate %73, %113, %153, %193, %233, %273, %313, %353, %393, %433, %473, %513 in 1 : vector<1x1xf32>, vector<1x1xf32>, vector<1x1xf32>, vector<1x1xf32>, vector<1x1xf32>, vector<1x1xf32>, vector<1x1xf32>, vector<1x1xf32>, vector<1x1xf32>, vector<1x1xf32>, vector<1x1xf32>, vector<1x1xf32> -> vector<1x12xf32>
    %c0_16 = arith.constant 0 : index
    %c0_17 = arith.constant 0 : index
    %515 = vector.load %arg4[%c0_16, %c0_17] : memref<3x4xf32, #tpu.memory_space<vmem>>, vector<3x4xf32>
    %516 = vector.extract_strided_slice %515 {offsets = [0, 0], sizes = [1, 4], strides = [1, 1]} : vector<3x4xf32> to vector<1x4xf32>
    %517 = vector.shape_cast %516 : vector<1x4xf32> to vector<4xf32>
    %518 = vector.extract_strided_slice %515 {offsets = [1, 0], sizes = [1, 4], strides = [1, 1]} : vector<3x4xf32> to vector<1x4xf32>
    %519 = vector.shape_cast %518 : vector<1x4xf32> to vector<4xf32>
    %520 = vector.extract_strided_slice %515 {offsets = [2, 0], sizes = [1, 4], strides = [1, 1]} : vector<3x4xf32> to vector<1x4xf32>
    %521 = vector.shape_cast %520 : vector<1x4xf32> to vector<4xf32>
    %c0_18 = arith.constant 0 : index
    %c0_19 = arith.constant 0 : index
    %522 = vector.load %arg3[%c0_18, %c0_19] : memref<12x4xf32, #tpu.memory_space<vmem>>, vector<12x4xf32>
    %cst_20 = arith.constant dense<0.000000e+00> : vector<1x4xf32>
    %523 = tpu.matmul %514, %522, %cst_20 {dimension_numbers = #tpu.dot_dimension_numbers<[1], [0], [0], [1], [0, 0, 1, 1], [], []>} : vector<1x12xf32>, vector<12x4xf32>, vector<1x4xf32> -> vector<1x4xf32>
    %524 = vector.shape_cast %517 : vector<4xf32> to vector<1x4xf32>
    %525 = arith.addf %523, %524 : vector<1x4xf32>
    %cst_21 = arith.constant dense<0.000000e+00> : vector<1xf32>
    %526 = vector.multi_reduction <add>, %525, %cst_21 [1] : vector<1x4xf32> to vector<1xf32>
    %527 = vector.shape_cast %526 : vector<1xf32> to vector<1x1xf32>
    %cst_22 = arith.constant 4.000000e+00 : f32
    %528 = vector.broadcast %cst_22 : f32 to vector<1x1xf32>
    %529 = arith.divf %527, %528 : vector<1x1xf32>
    %530 = vector.broadcast %529 : vector<1x1xf32> to vector<1x4xf32>
    %531 = arith.subf %525, %530 : vector<1x4xf32>
    %532 = arith.mulf %531, %531 : vector<1x4xf32>
    %cst_23 = arith.constant dense<0.000000e+00> : vector<1xf32>
    %533 = vector.multi_reduction <add>, %532, %cst_23 [1] : vector<1x4xf32> to vector<1xf32>
    %534 = vector.shape_cast %533 : vector<1xf32> to vector<1x1xf32>
    %cst_24 = arith.constant 4.000000e+00 : f32
    %535 = vector.broadcast %cst_24 : f32 to vector<1x1xf32>
    %536 = arith.divf %534, %535 : vector<1x1xf32>
    %537 = vector.broadcast %529 : vector<1x1xf32> to vector<1x4xf32>
    %538 = arith.subf %525, %537 : vector<1x4xf32>
    %cst_25 = arith.constant 9.99999974E-6 : f32
    %539 = vector.broadcast %cst_25 : f32 to vector<1x1xf32>
    %540 = arith.addf %536, %539 : vector<1x1xf32>
    %541 = math.rsqrt %540 : vector<1x1xf32>
    %542 = vector.broadcast %541 : vector<1x1xf32> to vector<1x4xf32>
    %543 = arith.mulf %538, %542 : vector<1x4xf32>
    %544 = vector.shape_cast %519 : vector<4xf32> to vector<1x4xf32>
    %545 = arith.mulf %543, %544 : vector<1x4xf32>
    %546 = vector.shape_cast %521 : vector<4xf32> to vector<1x4xf32>
    %547 = arith.addf %545, %546 : vector<1x4xf32>
    %cst_26 = arith.constant 0.000000e+00 : f32
    %548 = vector.broadcast %cst_26 : f32 to vector<1x4xf32>
    %549 = arith.maximumf %547, %548 : vector<1x4xf32>
    %cst_27 = arith.constant 0.000000e+00 : f32
    %550 = vector.broadcast %cst_27 : f32 to vector<1x4xf32>
    %551 = arith.subf %550, %549 : vector<1x4xf32>
    %552 = math.exp %551 : vector<1x4xf32>
    %cst_28 = arith.constant 1.000000e+00 : f32
    %553 = vector.broadcast %cst_28 : f32 to vector<1x4xf32>
    %554 = arith.addf %553, %552 : vector<1x4xf32>
    %555 = tpu.reciprocal %554 : vector<1x4xf32> -> vector<1x4xf32>
    %cst_29 = arith.constant dense<0.000000e+00> : vector<1xf32>
    %556 = vector.multi_reduction <add>, %2, %cst_29 [1] : vector<1x256xf32> to vector<1xf32>
    %557 = vector.shape_cast %556 : vector<1xf32> to vector<1x1xf32>
    %cst_30 = arith.constant 2.560000e+02 : f32
    %558 = vector.broadcast %cst_30 : f32 to vector<1x1xf32>
    %559 = arith.divf %557, %558 : vector<1x1xf32>
    %cst_31 = arith.constant dense<0.000000e+00> : vector<1xf32>
    %560 = vector.multi_reduction <add>, %3, %cst_31 [1] : vector<1x256xf32> to vector<1xf32>
    %561 = vector.shape_cast %560 : vector<1xf32> to vector<1x1xf32>
    %cst_32 = arith.constant 2.560000e+02 : f32
    %562 = vector.broadcast %cst_32 : f32 to vector<1x1xf32>
    %563 = arith.divf %561, %562 : vector<1x1xf32>
    %cst_33 = arith.constant dense<0.000000e+00> : vector<1xf32>
    %564 = vector.multi_reduction <add>, %4, %cst_33 [1] : vector<1x256xf32> to vector<1xf32>
    %565 = vector.shape_cast %564 : vector<1xf32> to vector<1x1xf32>
    %cst_34 = arith.constant 2.560000e+02 : f32
    %566 = vector.broadcast %cst_34 : f32 to vector<1x1xf32>
    %567 = arith.divf %565, %566 : vector<1x1xf32>
    %cst_35 = arith.constant dense<0.000000e+00> : vector<1xf32>
    %568 = vector.multi_reduction <add>, %5, %cst_35 [1] : vector<1x256xf32> to vector<1xf32>
    %569 = vector.shape_cast %568 : vector<1xf32> to vector<1x1xf32>
    %cst_36 = arith.constant 2.560000e+02 : f32
    %570 = vector.broadcast %cst_36 : f32 to vector<1x1xf32>
    %571 = arith.divf %569, %570 : vector<1x1xf32>
    %572 = tpu.concatenate %559, %563, %567, %571 in 1 : vector<1x1xf32>, vector<1x1xf32>, vector<1x1xf32>, vector<1x1xf32> -> vector<1x4xf32>
    %573 = arith.mulf %555, %572 : vector<1x4xf32>
    %c0_37 = arith.constant 0 : index
    %c0_38 = arith.constant 0 : index
    %c0_39 = arith.constant 0 : index
    %574 = vector.load %arg5[%c0_37, %c0_38, %c0_39] : memref<1x1x4xf32, #tpu.memory_space<vmem>>, vector<1x1x4xf32>
    %575 = vector.shape_cast %574 : vector<1x1x4xf32> to vector<1x4xf32>
    %576 = vector.shape_cast %573 : vector<1x4xf32> to vector<1x1x4xf32>
    tpu.vector_store %arg5[%c0_37, %c0_38, %c0_39], %576 {strides = array<i32>} : memref<1x1x4xf32, #tpu.memory_space<vmem>>, vector<1x1x4xf32>,
    return
  }
  func.func @transform_0(%arg0: i32) -> (i32, i32, i32) {
    %c0_i32 = arith.constant 0 : i32
    %c0_i32_0 = arith.constant 0 : i32
    %c0_i32_1 = arith.constant 0 : i32
    return %arg0, %c0_i32, %c0_i32_0 : i32, i32, i32
  }
  func.func @transform_1(%arg0: i32) -> i32 {
    %c0_i32 = arith.constant 0 : i32
    %c0_i32_0 = arith.constant 0 : i32
    return %c0_i32 : i32
  }
  func.func @transform_2(%arg0: i32) -> (i32, i32) {
    %c0_i32 = arith.constant 0 : i32
    %c0_i32_0 = arith.constant 0 : i32
    %c0_i32_1 = arith.constant 0 : i32
    return %c0_i32, %c0_i32_0 : i32, i32
  }
  func.func @transform_3(%arg0: i32) -> (i32, i32) {
    %c0_i32 = arith.constant 0 : i32
    %c0_i32_0 = arith.constant 0 : i32
    %c0_i32_1 = arith.constant 0 : i32
    return %c0_i32, %c0_i32_0 : i32, i32
  }
  func.func @transform_4(%arg0: i32) -> (i32, i32, i32) {
    %c0_i32 = arith.constant 0 : i32
    %c0_i32_0 = arith.constant 0 : i32
    %c0_i32_1 = arith.constant 0 : i32
    return %arg0, %c0_i32, %c0_i32_0 : i32, i32, i32
  }
}

</mosaic_0001>

<llo_original>
// kernel: tpu_custom_call.1
$region0: #{tpu_custom_call.1}
  #allocation0 [shape = 'u32[]', space=smem, size = 0x4, offset = 0x4, fixed_abs, tag = 'smem constant byte address 0x4 - core index']
  #allocation1 [shape = 'u32[144,128]{1,0:T(1,128)}', space=vmem, size = 0x12000, scoped, tag = 'internal scratch']
  %s0 = inlined_call_operand.vmem [shape: f32[2,1,1024], index: 0, kind: input, shape index: {}]
  %s1 = inlined_call_operand.vmem [shape: f32[125], index: 1, kind: input, shape index: {}]
  %s2 = inlined_call_operand.vmem [shape: f32[12,4], index: 2, kind: input, shape index: {}]
  %s3 = inlined_call_operand.vmem [shape: f32[3,4], index: 3, kind: input, shape index: {}]
  %s4 = inlined_call_operand.hbm [shape: f32[2,1,4], index: 4, kind: output, shape index: {}]
  %s5 = sld [smem:[#allocation0]]
  $region53: #{tpu_custom_call.1} parent=0
    _
  %s7 = ssub.s32 1, %s5
  %s8 = scalar_select 0, %s7, %s5
  $region1: #{tpu_custom_call.1} parent=0
    #allocation2 [shape = 'u8[512]{0}', space=smem, size = 0x200, scoped, tag = 'input window, operand 1, single buffered']
    #allocation3 [shape = 's32[2]{0}', space=sflag, size = 0x8, scoped, tag = 'scoped memory for tpu_custom_call.1']
    #allocation4 [shape = 's32[2]{0}', space=sflag, size = 0x8, scoped, tag = 'scoped memory for tpu_custom_call.1']
    #allocation5 [shape = 'u8[1024]{0}', space=vmem, size = 0x400, scoped, tag = 'output window, operand 0']
    %9 = vsyncpa [#allocation4], 0
    %10 = vsyncpa [#allocation3], 0
    %s11 = scalar_lea.sflag [#allocation3], 1
    %12 = vsyncpa %s11, 0
    loop: start=0, step=1, limit=4
    $region2: #{tpu_custom_call.1} parent=1 // loop_pre_header
      _
    $region3: #{tpu_custom_call.1} parent=1 // loop_header
      %s14 = sphi 0, %s18
      %p15 = scmp.ge.s32.totalorder %s14, 4
      %s24 = sphi 0, %s26
      %s27 = sphi 0, %s24
      %s28 = sphi 0, %s27
      %s44 = sphi 0, %s28
      %s48 = sphi 0, %s48
      %s50 = sphi 0, %s48
      %s51 = sphi 0, %s50
      %s65 = sphi 0, %s51
      %s69 = sphi 0, %s69
      %s71 = sphi 0, %s69
      %s72 = sphi 0, %s71
      %s86 = sphi 0, %s72
      %s90 = sphi 0, %s90
      %s92 = sphi 0, %s90
      %s93 = sphi 0, %s92
      %s107 = sphi 0, %s93
      %s113 = sphi 0, %s115
      %s116 = sphi 0, %s113
      %s117 = sphi 0, %s116
      %s133 = sphi 0, %s117
    $region4: #{tpu_custom_call.1} parent=1 // loop_header_branch
      %17 = sbr.rel (%p15) target = $region8
    $region5: #{tpu_custom_call.1} parent=1 // loop_body
      %s19 = ssub.s32 %s14, 1
      %s20 = ssub.s32 %s14, 2
      %s21 = sadd.s32 %s14, 1
      %s22 = ssub.s32 %s14, %s21
      %p23 = scmp.eq.s32.totalorder %s22, 0
      %s25 = sadd.s32 %s24, 1
      %s26 = scalar_select %p23, %s24, %s25
      %p29 = pneg %p23
      %p30 = scmp.eq.s32.totalorder %s14, 1
      %p31 = por %p29, %p30
      %p32 = scmp.ne.s32.totalorder %s24, %s27
      %p33 = scmp.eq.s32.totalorder %s14, 0
      %p34 = por %p32, %p33
      %p35 = scmp.ne.s32.totalorder %s24, %s27
      %p36 = scmp.eq.s32.totalorder %s19, 1
      %p37 = por %p35, %p36
      %p38 = scmp.ne.s32.totalorder %s27, %s28
      %p39 = scmp.eq.s32.totalorder %s19, 0
      %p40 = por %p38, %p39
      %p41 = scmp.ne.s32.totalorder %s27, %s28
      %p42 = scmp.eq.s32.totalorder %s20, 1
      %p43 = por %p41, %p42
      %p45 = scmp.ne.s32.totalorder %s28, %s44
      %p46 = scmp.eq.s32.totalorder %s20, 0
      %p47 = por %p45, %p46
      %s49 = sadd.s32 %s48, 1
      %p52 = scmp.eq.s32.totalorder %s14, 1
      %p53 = scmp.ne.s32.totalorder %s48, %s50
      %p54 = scmp.eq.s32.totalorder %s14, 0
      %p55 = por %p53, %p54
      %p56 = scmp.ne.s32.totalorder %s48, %s50
      %p57 = scmp.eq.s32.totalorder %s19, 1
      %p58 = por %p56, %p57
      %p59 = scmp.ne.s32.totalorder %s50, %s51
      %p60 = scmp.eq.s32.totalorder %s19, 0
      %p61 = por %p59, %p60
      %p62 = scmp.ne.s32.totalorder %s50, %s51
      %p63 = scmp.eq.s32.totalorder %s20, 1
      %p64 = por %p62, %p63
      %p66 = scmp.ne.s32.totalorder %s51, %s65
      %p67 = scmp.eq.s32.totalorder %s20, 0
      %p68 = por %p66, %p67
      %s70 = sadd.s32 %s69, 1
      %p73 = scmp.eq.s32.totalorder %s14, 1
      %p74 = scmp.ne.s32.totalorder %s69, %s71
      %p75 = scmp.eq.s32.totalorder %s14, 0
      %p76 = por %p74, %p75
      %p77 = scmp.ne.s32.totalorder %s69, %s71
      %p78 = scmp.eq.s32.totalorder %s19, 1
      %p79 = por %p77, %p78
      %p80 = scmp.ne.s32.totalorder %s71, %s72
      %p81 = scmp.eq.s32.totalorder %s19, 0
      %p82 = por %p80, %p81
      %p83 = scmp.ne.s32.totalorder %s71, %s72
      %p84 = scmp.eq.s32.totalorder %s20, 1
      %p85 = por %p83, %p84
      %p87 = scmp.ne.s32.totalorder %s72, %s86
      %p88 = scmp.eq.s32.totalorder %s20, 0
      %p89 = por %p87, %p88
      %s91 = sadd.s32 %s90, 1
      %p94 = scmp.eq.s32.totalorder %s14, 1
      %p95 = scmp.ne.s32.totalorder %s90, %s92
      %p96 = scmp.eq.s32.totalorder %s14, 0
      %p97 = por %p95, %p96
      %p98 = scmp.ne.s32.totalorder %s90, %s92
      %p99 = scmp.eq.s32.totalorder %s19, 1
      %p100 = por %p98, %p99
      %p101 = scmp.ne.s32.totalorder %s92, %s93
      %p102 = scmp.eq.s32.totalorder %s19, 0
      %p103 = por %p101, %p102
      %p104 = scmp.ne.s32.totalorder %s92, %s93
      %p105 = scmp.eq.s32.totalorder %s20, 1
      %p106 = por %p104, %p105
      %p108 = scmp.ne.s32.totalorder %s93, %s107
      %p109 = scmp.eq.s32.totalorder %s20, 0
      %p110 = por %p108, %p109
      %s111 = ssub.s32 %s14, %s21
      %p112 = scmp.eq.s32.totalorder %s111, 0
      %s114 = sadd.s32 %s113, 1
      %s115 = scalar_select %p112, %s113, %s114
      %p118 = pneg %p112
      %p119 = scmp.eq.s32.totalorder %s14, 1
      %p120 = por %p118, %p119
      %p121 = scmp.ne.s32.totalorder %s113, %s116
      %p122 = scmp.eq.s32.totalorder %s14, 0
      %p123 = por %p121, %p122
      %p124 = scmp.ne.s32.totalorder %s113, %s116
      %p125 = scmp.eq.s32.totalorder %s19, 1
      %p126 = por %p124, %p125
      %p127 = scmp.ne.s32.totalorder %s116, %s117
      %p128 = scmp.eq.s32.totalorder %s19, 0
      %p129 = por %p127, %p128
      %p130 = scmp.ne.s32.totalorder %s116, %s117
      %p131 = scmp.eq.s32.totalorder %s20, 1
      %p132 = por %p130, %p131
      %p134 = scmp.ne.s32.totalorder %s117, %s133
      %p135 = scmp.eq.s32.totalorder %s20, 0
      %p136 = por %p134, %p135
      %p137 = scmp.le.s32.totalorder 1, %s14
      %p138 = scmp.lt.s32.totalorder %s14, 3
      %p139 = pnand %p137, %p138
      %p140 = pneg %p139
      // Predicated region
      $region9: #{tpu_custom_call.1} parent=5 // pred_check
        _
      $region10: #{tpu_custom_call.1} parent=5 // pred_check_branch
        %142 = sbr.rel (%p139) target = $region12
      $region11: #{tpu_custom_call.1} parent=5 // pred_region
        %s143 = ssub.s32 %s14, 1
        // Predicated region
        $region13: #{tpu_custom_call.1} parent=11 // pred_check
          %p144 = pneg %p61
        $region14: #{tpu_custom_call.1} parent=11 // pred_check_branch
          %146 = sbr.rel (%p144) target = $region16
        $region15: #{tpu_custom_call.1} parent=11 // pred_region
          %s148 = ssub.s32 16, 16
          %149 = vsyncadd [#allocation4], %s148
          %s151 = sshll.u32 %s1, 4
          %s152 = int_to_ptr.vmem [resolvable:$true] %s151
          %154 = dma.vmem_to_smem %s152, 16, [#allocation2], [#allocation4]
        $region16: #{tpu_custom_call.1} parent=11 // pred_fallthru
          _
        // Predicated region
        $region17: #{tpu_custom_call.1} parent=11 // pred_check
          %p155 = pneg %p82
        $region18: #{tpu_custom_call.1} parent=11 // pred_check_branch
          %157 = sbr.rel (%p155) target = $region20
        $region19: #{tpu_custom_call.1} parent=11 // pred_region
          _
        $region20: #{tpu_custom_call.1} parent=11 // pred_fallthru
          _
        // Predicated region
        $region21: #{tpu_custom_call.1} parent=11 // pred_check
          %p158 = pneg %p103
        $region22: #{tpu_custom_call.1} parent=11 // pred_check_branch
          %160 = sbr.rel (%p158) target = $region24
        $region23: #{tpu_custom_call.1} parent=11 // pred_region
          _
        $region24: #{tpu_custom_call.1} parent=11 // pred_fallthru
          _
      $region12: #{tpu_custom_call.1} parent=5 // pred_fallthru
        _
      %p161 = scmp.lt.s32.totalorder %s14, 2
      // Predicated region
      $region25: #{tpu_custom_call.1} parent=5 // pred_check
        %p162 = pneg %p161
      $region26: #{tpu_custom_call.1} parent=5 // pred_check_branch
        %164 = sbr.rel (%p162) target = $region28
      $region27: #{tpu_custom_call.1} parent=5 // pred_region
        // Predicated region
        $region29: #{tpu_custom_call.1} parent=27 // pred_check
          %p165 = pneg %p34
        $region30: #{tpu_custom_call.1} parent=27 // pred_check_branch
          %167 = sbr.rel (%p165) target = $region32
        $region31: #{tpu_custom_call.1} parent=27 // pred_region
          %p168 = scmp.lt.s32.totalorder %s14, 1
          %s169 = scalar_select %p168, %s14, 1
          %s170 = smul.addr %s169, 8
          %s171 = scalar_lea.vmem %s0, %s170
        $region32: #{tpu_custom_call.1} parent=27 // pred_fallthru
          _
      $region28: #{tpu_custom_call.1} parent=5 // pred_fallthru
        _
      %p172 = scmp.le.s32.totalorder 1, %s14
      %p173 = scmp.lt.s32.totalorder %s14, 3
      %p174 = pnand %p172, %p173
      %p175 = pneg %p174
      // Predicated region
      $region33: #{tpu_custom_call.1} parent=5 // pred_check
        _
      $region34: #{tpu_custom_call.1} parent=5 // pred_check_branch
        %177 = sbr.rel (%p174) target = $region36
      $region35: #{tpu_custom_call.1} parent=5 // pred_region
        %s178 = ssub.s32 %s14, 1
        // Predicated region
        $region37: #{tpu_custom_call.1} parent=35 // pred_check
          %p179 = pneg %p61
        $region38: #{tpu_custom_call.1} parent=35 // pred_check_branch
          %181 = sbr.rel (%p179) target = $region40
        $region39: #{tpu_custom_call.1} parent=35 // pred_region
          %182 = dma.done [#allocation4], 16
        $region40: #{tpu_custom_call.1} parent=35 // pred_fallthru
          _
        %183 = sfence
        %p184 = scmp.lt.s32.totalorder %s19, 1
        %s185 = scalar_select %p184, %s19, 1
        %s186 = smul.addr %s185, 8
        %s187 = scalar_lea.vmem %s0, %s186
        %p188 = pneg %p40
        %p189 = pneg %p37
        %p190 = pneg %p61
        %p191 = pneg %p58
        %p192 = pneg %p82
        %p193 = pneg %p79
        %p194 = pneg %p103
        %p195 = pneg %p100
        %p196 = pneg %p129
        %p197 = pneg %p126
        %s198 = sand.u32 %s116, 1
        %s199 = scalar_lea.sflag [#allocation3], %s198
        %s200 = sand.u32 %s116, 1
        %s201 = scalar_lea.vmem [#allocation5], %s200
        %p202 = scmp.lt.s32.totalorder %s19, 1
        %s203 = scalar_select %p202, %s19, 1
        %s204 = smul.addr %s203, 8
        %s205 = scalar_lea.vmem %s0, %s204
        %v206 = vld [vmem:[%s205] sm:$0xff]
        %s207 = sld [smem:[#allocation2 + $0x7c]]
        %s208 = sld [smem:[#allocation2 + $0x78]]
        %v209 = vstv %s208
        %v210 = vmul.f32 %v209, %v206
        %v211 = vstv %s207
        %v212 = vadd.f32 %v211, %v210
        %s213 = sld [smem:[#allocation2 + $0x79]]
        %v214 = vstv %s213
        %v216 = vrot.slane %v206, 2
        %v218 = vmul.f32 %v214, %v216
        %v219 = vadd.f32 %v212, %v218
        %s220 = sld [smem:[#allocation2 + $0x7a]]
        %v221 = vstv %s220
        %v222 = vrot.slane %v206, 4
        %v224 = vmul.f32 %v221, %v222
        %v225 = vadd.f32 %v219, %v224
        %s226 = sld [smem:[#allocation2 + $0x7b]]
        %v227 = vstv %s226
        %v228 = vrot.slane %v206, 6
        %v230 = vmul.f32 %v227, %v228
        %v231 = vadd.f32 %v225, %v230
        %v233 = vlaneseq
        %v234 = vshrl.u32 %v233, 7
        %v235 = vsub.s32 0, %v234
        %v236 = vrot.slane %v231, %v235
        %v237 = vlaneseq
        %v238 = vshrl.u32 %v237, 7
        %v239 = vsub.s32 1, %v238
        %v240 = vrot.slane %v231, %v239
        %vm243 = vcmask 1040384
        %v244 = vsel %vm243, %v236, -inf
        %v245 = vsel %vm243, %v240, -inf
        %v246 = vmax.f32 %v244, %v245
        %247 = vmax.xlane.f32.xlu0 %v246
        %v248 = vpop.xlane.xlu0 %247
        %v250 = vlaneseq
        %v251 = vshrl.u32 %v250, 7
        %v252 = vsub.s32 0, %v251
        %v253 = vrot.slane %v248, %v252
        %v255 = vsub.f32 %v231, %v253
        %v256 = vmul.f32 %v255, 1.442695
        %v257 = vpow.pop %v256
        %v259 = vlaneseq
        %v260 = vshrl.u32 %v259, 7
        %v261 = vsub.s32 0, %v260
        %v262 = vrot.slane %v257, %v261
        %v263 = vlaneseq
        %v264 = vshrl.u32 %v263, 7
        %v265 = vsub.s32 1, %v264
        %v266 = vrot.slane %v257, %v265
        %v269 = vsel %vm243, %v262, 0.0
        %v270 = vsel %vm243, %v266, 0.0
        %v271 = vadd.f32 %v269, %v270
        %272 = vadd.xlane.f32.xlu0 %v271
        %v273 = vpop.xlane.xlu0 %272
        %v274 = vrcp.pop %v273
        %v276 = vlaneseq
        %v277 = vshrl.u32 %v276, 7
        %v278 = vsub.s32 0, %v277
        %v279 = vrot.slane %v274, %v278
        %v281 = vmul.f32 %v257, %v279
        %s282 = sld [smem:[#allocation2 + $0x30]]
        %s283 = sld [smem:[#allocation2]]
        %v284 = vstv %s283
        %v285 = vmul.f32 %v284, %v206
        %v286 = vstv %s282
        %v287 = vadd.f32 %v286, %v285
        %s288 = sld [smem:[#allocation2 + $0x6c]]
        %s289 = sld [smem:[#allocation2 + $0x3c]]
        %v290 = vstv %s289
        %v291 = vmul.f32 %v290, %v206
        %v292 = vstv %s288
        %v293 = vadd.f32 %v292, %v291
        %s294 = sld [smem:[#allocation2 + $0x1]]
        %v295 = vstv %s294
        %v296 = vmul.f32 %v295, %v216
        %v297 = vadd.f32 %v287, %v296
        %s298 = sld [smem:[#allocation2 + $0x3d]]
        %v299 = vstv %s298
        %v300 = vmul.f32 %v299, %v216
        %v301 = vadd.f32 %v293, %v300
        %s302 = sld [smem:[#allocation2 + $0x2]]
        %v303 = vstv %s302
        %v304 = vmul.f32 %v303, %v222
        %v305 = vadd.f32 %v297, %v304
        %s306 = sld [smem:[#allocation2 + $0x3e]]
        %v307 = vstv %s306
        %v308 = vmul.f32 %v307, %v222
        %v309 = vadd.f32 %v301, %v308
        %s310 = sld [smem:[#allocation2 + $0x3]]
        %v311 = vstv %s310
        %v312 = vmul.f32 %v311, %v228
        %v313 = vadd.f32 %v305, %v312
        %s314 = sld [smem:[#allocation2 + $0x3f]]
        %v315 = vstv %s314
        %v316 = vmul.f32 %v315, %v228
        %v317 = vadd.f32 %v309, %v316
        %v318 = vmul.f32 %v313, %v317
        %v319 = vmul.f32 %v318, %v281
        %v321 = vlaneseq
        %v322 = vshrl.u32 %v321, 7
        %v323 = vsub.s32 0, %v322
        %v324 = vrot.slane %v319, %v323
        %v325 = vlaneseq
        %v326 = vshrl.u32 %v325, 7
        %v327 = vsub.s32 1, %v326
        %v328 = vrot.slane %v319, %v327
        %v331 = vsel %vm243, %v324, 0.0
        %v332 = vsel %vm243, %v328, 0.0
        %v333 = vadd.f32 %v331, %v332
        %334 = vadd.xlane.f32.xlu0 %v333
        %v335 = vpop.xlane.xlu0 %334
        %s336 = sld [smem:[#allocation2 + $0x31]]
        %s337 = sld [smem:[#allocation2 + $0x4]]
        %v338 = vstv %s337
        %v339 = vmul.f32 %v338, %v206
        %v340 = vstv %s336
        %v341 = vadd.f32 %v340, %v339
        %s342 = sld [smem:[#allocation2 + $0x6d]]
        %s343 = sld [smem:[#allocation2 + $0x40]]
        %v344 = vstv %s343
        %v345 = vmul.f32 %v344, %v206
        %v346 = vstv %s342
        %v347 = vadd.f32 %v346, %v345
        %s348 = sld [smem:[#allocation2 + $0x5]]
        %v349 = vstv %s348
        %v350 = vmul.f32 %v349, %v216
        %v351 = vadd.f32 %v341, %v350
        %s352 = sld [smem:[#allocation2 + $0x41]]
        %v353 = vstv %s352
        %v354 = vmul.f32 %v353, %v216
        %v355 = vadd.f32 %v347, %v354
        %s356 = sld [smem:[#allocation2 + $0x6]]
        %v357 = vstv %s356
        %v358 = vmul.f32 %v357, %v222
        %v359 = vadd.f32 %v351, %v358
        %s360 = sld [smem:[#allocation2 + $0x42]]
        %v361 = vstv %s360
        %v362 = vmul.f32 %v361, %v222
        %v363 = vadd.f32 %v355, %v362
        %s364 = sld [smem:[#allocation2 + $0x7]]
        %v365 = vstv %s364
        %v366 = vmul.f32 %v365, %v228
        %v367 = vadd.f32 %v359, %v366
        %s368 = sld [smem:[#allocation2 + $0x43]]
        %v369 = vstv %s368
        %v370 = vmul.f32 %v369, %v228
        %v371 = vadd.f32 %v363, %v370
        %v372 = vmul.f32 %v367, %v371
        %v373 = vmul.f32 %v372, %v281
        %v375 = vlaneseq
        %v376 = vshrl.u32 %v375, 7
        %v377 = vsub.s32 0, %v376
        %v378 = vrot.slane %v373, %v377
        %v379 = vlaneseq
        %v380 = vshrl.u32 %v379, 7
        %v381 = vsub.s32 1, %v380
        %v382 = vrot.slane %v373, %v381
        %v385 = vsel %vm243, %v378, 0.0
        %v386 = vsel %vm243, %v382, 0.0
        %v387 = vadd.f32 %v385, %v386
        %388 = vadd.xlane.f32.xlu0 %v387
        %v389 = vpop.xlane.xlu0 %388
        %s390 = sld [smem:[#allocation2 + $0x32]]
        %s391 = sld [smem:[#allocation2 + $0x8]]
        %v392 = vstv %s391
        %v393 = vmul.f32 %v392, %v206
        %v394 = vstv %s390
        %v395 = vadd.f32 %v394, %v393
        %s396 = sld [smem:[#allocation2 + $0x6e]]
        %s397 = sld [smem:[#allocation2 + $0x44]]
        %v398 = vstv %s397
        %v399 = vmul.f32 %v398, %v206
        %v400 = vstv %s396
        %v401 = vadd.f32 %v400, %v399
        %s402 = sld [smem:[#allocation2 + $0x9]]
        %v403 = vstv %s402
        %v404 = vmul.f32 %v403, %v216
        %v405 = vadd.f32 %v395, %v404
        %s406 = sld [smem:[#allocation2 + $0x45]]
        %v407 = vstv %s406
        %v408 = vmul.f32 %v407, %v216
        %v409 = vadd.f32 %v401, %v408
        %s410 = sld [smem:[#allocation2 + $0xa]]
        %v411 = vstv %s410
        %v412 = vmul.f32 %v411, %v222
        %v413 = vadd.f32 %v405, %v412
        %s414 = sld [smem:[#allocation2 + $0x46]]
        %v415 = vstv %s414
        %v416 = vmul.f32 %v415, %v222
        %v417 = vadd.f32 %v409, %v416
        %s418 = sld [smem:[#allocation2 + $0xb]]
        %v419 = vstv %s418
        %v420 = vmul.f32 %v419, %v228
        %v421 = vadd.f32 %v413, %v420
        %s422 = sld [smem:[#allocation2 + $0x47]]
        %v423 = vstv %s422
        %v424 = vmul.f32 %v423, %v228
        %v425 = vadd.f32 %v417, %v424
        %v426 = vmul.f32 %v421, %v425
        %v427 = vmul.f32 %v426, %v281
        %v429 = vlaneseq
        %v430 = vshrl.u32 %v429, 7
        %v431 = vsub.s32 0, %v430
        %v432 = vrot.slane %v427, %v431
        %v433 = vlaneseq
        %v434 = vshrl.u32 %v433, 7
        %v435 = vsub.s32 1, %v434
        %v436 = vrot.slane %v427, %v435
        %v439 = vsel %vm243, %v432, 0.0
        %v440 = vsel %vm243, %v436, 0.0
        %v441 = vadd.f32 %v439, %v440
        %442 = vadd.xlane.f32.xlu0 %v441
        %v443 = vpop.xlane.xlu0 %442
        %s444 = sld [smem:[#allocation2 + $0x33]]
        %s445 = sld [smem:[#allocation2 + $0xc]]
        %v446 = vstv %s445
        %v447 = vmul.f32 %v446, %v206
        %v448 = vstv %s444
        %v449 = vadd.f32 %v448, %v447
        %s450 = sld [smem:[#allocation2 + $0x6f]]
        %s451 = sld [smem:[#allocation2 + $0x48]]
        %v452 = vstv %s451
        %v453 = vmul.f32 %v452, %v206
        %v454 = vstv %s450
        %v455 = vadd.f32 %v454, %v453
        %s456 = sld [smem:[#allocation2 + $0xd]]
        %v457 = vstv %s456
        %v458 = vmul.f32 %v457, %v216
        %v459 = vadd.f32 %v449, %v458
        %s460 = sld [smem:[#allocation2 + $0x49]]
        %v461 = vstv %s460
        %v462 = vmul.f32 %v461, %v216
        %v463 = vadd.f32 %v455, %v462
        %s464 = sld [smem:[#allocation2 + $0xe]]
        %v465 = vstv %s464
        %v466 = vmul.f32 %v465, %v222
        %v467 = vadd.f32 %v459, %v466
        %s468 = sld [smem:[#allocation2 + $0x4a]]
        %v469 = vstv %s468
        %v470 = vmul.f32 %v469, %v222
        %v471 = vadd.f32 %v463, %v470
        %s472 = sld [smem:[#allocation2 + $0xf]]
        %v473 = vstv %s472
        %v474 = vmul.f32 %v473, %v228
        %v475 = vadd.f32 %v467, %v474
        %s476 = sld [smem:[#allocation2 + $0x4b]]
        %v477 = vstv %s476
        %v478 = vmul.f32 %v477, %v228
        %v479 = vadd.f32 %v471, %v478
        %v480 = vmul.f32 %v475, %v479
        %v481 = vmul.f32 %v480, %v281
        %v483 = vlaneseq
        %v484 = vshrl.u32 %v483, 7
        %v485 = vsub.s32 0, %v484
        %v486 = vrot.slane %v481, %v485
        %v487 = vlaneseq
        %v488 = vshrl.u32 %v487, 7
        %v489 = vsub.s32 1, %v488
        %v490 = vrot.slane %v481, %v489
        %v493 = vsel %vm243, %v486, 0.0
        %v494 = vsel %vm243, %v490, 0.0
        %v495 = vadd.f32 %v493, %v494
        %496 = vadd.xlane.f32.xlu0 %v495
        %v497 = vpop.xlane.xlu0 %496
        %s498 = sld [smem:[#allocation2 + $0x34]]
        %s499 = sld [smem:[#allocation2 + $0x10]]
        %v500 = vstv %s499
        %v501 = vmul.f32 %v500, %v206
        %v502 = vstv %s498
        %v503 = vadd.f32 %v502, %v501
        %s504 = sld [smem:[#allocation2 + $0x70]]
        %s505 = sld [smem:[#allocation2 + $0x4c]]
        %v506 = vstv %s505
        %v507 = vmul.f32 %v506, %v206
        %v508 = vstv %s504
        %v509 = vadd.f32 %v508, %v507
        %s510 = sld [smem:[#allocation2 + $0x11]]
        %v511 = vstv %s510
        %v512 = vmul.f32 %v511, %v216
        %v513 = vadd.f32 %v503, %v512
        %s514 = sld [smem:[#allocation2 + $0x4d]]
        %v515 = vstv %s514
        %v516 = vmul.f32 %v515, %v216
        %v517 = vadd.f32 %v509, %v516
        %s518 = sld [smem:[#allocation2 + $0x12]]
        %v519 = vstv %s518
        %v520 = vmul.f32 %v519, %v222
        %v521 = vadd.f32 %v513, %v520
        %s522 = sld [smem:[#allocation2 + $0x4e]]
        %v523 = vstv %s522
        %v524 = vmul.f32 %v523, %v222
        %v525 = vadd.f32 %v517, %v524
        %s526 = sld [smem:[#allocation2 + $0x13]]
        %v527 = vstv %s526
        %v528 = vmul.f32 %v527, %v228
        %v529 = vadd.f32 %v521, %v528
        %s530 = sld [smem:[#allocation2 + $0x4f]]
        %v531 = vstv %s530
        %v532 = vmul.f32 %v531, %v228
        %v533 = vadd.f32 %v525, %v532
        %v534 = vmul.f32 %v529, %v533
        %v535 = vmul.f32 %v534, %v281
        %v537 = vlaneseq
        %v538 = vshrl.u32 %v537, 7
        %v539 = vsub.s32 0, %v538
        %v540 = vrot.slane %v535, %v539
        %v541 = vlaneseq
        %v542 = vshrl.u32 %v541, 7
        %v543 = vsub.s32 1, %v542
        %v544 = vrot.slane %v535, %v543
        %v547 = vsel %vm243, %v540, 0.0
        %v548 = vsel %vm243, %v544, 0.0
        %v549 = vadd.f32 %v547, %v548
        %550 = vadd.xlane.f32.xlu0 %v549
        %v551 = vpop.xlane.xlu0 %550
        %s552 = sld [smem:[#allocation2 + $0x35]]
        %s553 = sld [smem:[#allocation2 + $0x14]]
        %v554 = vstv %s553
        %v555 = vmul.f32 %v554, %v206
        %v556 = vstv %s552
        %v557 = vadd.f32 %v556, %v555
        %s558 = sld [smem:[#allocation2 + $0x71]]
        %s559 = sld [smem:[#allocation2 + $0x50]]
        %v560 = vstv %s559
        %v561 = vmul.f32 %v560, %v206
        %v562 = vstv %s558
        %v563 = vadd.f32 %v562, %v561
        %s564 = sld [smem:[#allocation2 + $0x15]]
        %v565 = vstv %s564
        %v566 = vmul.f32 %v565, %v216
        %v567 = vadd.f32 %v557, %v566
        %s568 = sld [smem:[#allocation2 + $0x51]]
        %v569 = vstv %s568
        %v570 = vmul.f32 %v569, %v216
        %v571 = vadd.f32 %v563, %v570
        %s572 = sld [smem:[#allocation2 + $0x16]]
        %v573 = vstv %s572
        %v574 = vmul.f32 %v573, %v222
        %v575 = vadd.f32 %v567, %v574
        %s576 = sld [smem:[#allocation2 + $0x52]]
        %v577 = vstv %s576
        %v578 = vmul.f32 %v577, %v222
        %v579 = vadd.f32 %v571, %v578
        %s580 = sld [smem:[#allocation2 + $0x17]]
        %v581 = vstv %s580
        %v582 = vmul.f32 %v581, %v228
        %v583 = vadd.f32 %v575, %v582
        %s584 = sld [smem:[#allocation2 + $0x53]]
        %v585 = vstv %s584
        %v586 = vmul.f32 %v585, %v228
        %v587 = vadd.f32 %v579, %v586
        %v588 = vmul.f32 %v583, %v587
        %v589 = vmul.f32 %v588, %v281
        %v591 = vlaneseq
        %v592 = vshrl.u32 %v591, 7
        %v593 = vsub.s32 0, %v592
        %v594 = vrot.slane %v589, %v593
        %v595 = vlaneseq
        %v596 = vshrl.u32 %v595, 7
        %v597 = vsub.s32 1, %v596
        %v598 = vrot.slane %v589, %v597
        %v601 = vsel %vm243, %v594, 0.0
        %v602 = vsel %vm243, %v598, 0.0
        %v603 = vadd.f32 %v601, %v602
        %604 = vadd.xlane.f32.xlu0 %v603
        %v605 = vpop.xlane.xlu0 %604
        %s606 = sld [smem:[#allocation2 + $0x36]]
        %s607 = sld [smem:[#allocation2 + $0x18]]
        %v608 = vstv %s607
        %v609 = vmul.f32 %v608, %v206
        %v610 = vstv %s606
        %v611 = vadd.f32 %v610, %v609
        %s612 = sld [smem:[#allocation2 + $0x72]]
        %s613 = sld [smem:[#allocation2 + $0x54]]
        %v614 = vstv %s613
        %v615 = vmul.f32 %v614, %v206
        %v616 = vstv %s612
        %v617 = vadd.f32 %v616, %v615
        %s618 = sld [smem:[#allocation2 + $0x19]]
        %v619 = vstv %s618
        %v620 = vmul.f32 %v619, %v216
        %v621 = vadd.f32 %v611, %v620
        %s622 = sld [smem:[#allocation2 + $0x55]]
        %v623 = vstv %s622
        %v624 = vmul.f32 %v623, %v216
        %v625 = vadd.f32 %v617, %v624
        %s626 = sld [smem:[#allocation2 + $0x1a]]
        %v627 = vstv %s626
        %v628 = vmul.f32 %v627, %v222
        %v629 = vadd.f32 %v621, %v628
        %s630 = sld [smem:[#allocation2 + $0x56]]
        %v631 = vstv %s630
        %v632 = vmul.f32 %v631, %v222
        %v633 = vadd.f32 %v625, %v632
        %s634 = sld [smem:[#allocation2 + $0x1b]]
        %v635 = vstv %s634
        %v636 = vmul.f32 %v635, %v228
        %v637 = vadd.f32 %v629, %v636
        %s638 = sld [smem:[#allocation2 + $0x57]]
        %v639 = vstv %s638
        %v640 = vmul.f32 %v639, %v228
        %v641 = vadd.f32 %v633, %v640
        %v642 = vmul.f32 %v637, %v641
        %v643 = vmul.f32 %v642, %v281
        %v645 = vlaneseq
        %v646 = vshrl.u32 %v645, 7
        %v647 = vsub.s32 0, %v646
        %v648 = vrot.slane %v643, %v647
        %v649 = vlaneseq
        %v650 = vshrl.u32 %v649, 7
        %v651 = vsub.s32 1, %v650
        %v652 = vrot.slane %v643, %v651
        %v655 = vsel %vm243, %v648, 0.0
        %v656 = vsel %vm243, %v652, 0.0
        %v657 = vadd.f32 %v655, %v656
        %658 = vadd.xlane.f32.xlu0 %v657
        %v659 = vpop.xlane.xlu0 %658
        %s660 = sld [smem:[#allocation2 + $0x37]]
        %s661 = sld [smem:[#allocation2 + $0x1c]]
        %v662 = vstv %s661
        %v663 = vmul.f32 %v662, %v206
        %v664 = vstv %s660
        %v665 = vadd.f32 %v664, %v663
        %s666 = sld [smem:[#allocation2 + $0x73]]
        %s667 = sld [smem:[#allocation2 + $0x58]]
        %v668 = vstv %s667
        %v669 = vmul.f32 %v668, %v206
        %v670 = vstv %s666
        %v671 = vadd.f32 %v670, %v669
        %s672 = sld [smem:[#allocation2 + $0x1d]]
        %v673 = vstv %s672
        %v674 = vmul.f32 %v673, %v216
        %v675 = vadd.f32 %v665, %v674
        %s676 = sld [smem:[#allocation2 + $0x59]]
        %v677 = vstv %s676
        %v678 = vmul.f32 %v677, %v216
        %v679 = vadd.f32 %v671, %v678
        %s680 = sld [smem:[#allocation2 + $0x1e]]
        %v681 = vstv %s680
        %v682 = vmul.f32 %v681, %v222
        %v683 = vadd.f32 %v675, %v682
        %s684 = sld [smem:[#allocation2 + $0x5a]]
        %v685 = vstv %s684
        %v686 = vmul.f32 %v685, %v222
        %v687 = vadd.f32 %v679, %v686
        %s688 = sld [smem:[#allocation2 + $0x1f]]
        %v689 = vstv %s688
        %v690 = vmul.f32 %v689, %v228
        %v691 = vadd.f32 %v683, %v690
        %s692 = sld [smem:[#allocation2 + $0x5b]]
        %v693 = vstv %s692
        %v694 = vmul.f32 %v693, %v228
        %v695 = vadd.f32 %v687, %v694
        %v696 = vmul.f32 %v691, %v695
        %v697 = vmul.f32 %v696, %v281
        %v699 = vlaneseq
        %v700 = vshrl.u32 %v699, 7
        %v701 = vsub.s32 0, %v700
        %v702 = vrot.slane %v697, %v701
        %v703 = vlaneseq
        %v704 = vshrl.u32 %v703, 7
        %v705 = vsub.s32 1, %v704
        %v706 = vrot.slane %v697, %v705
        %v709 = vsel %vm243, %v702, 0.0
        %v710 = vsel %vm243, %v706, 0.0
        %v711 = vadd.f32 %v709, %v710
        %712 = vadd.xlane.f32.xlu0 %v711
        %v713 = vpop.xlane.xlu0 %712
        %s714 = sld [smem:[#allocation2 + $0x38]]
        %s715 = sld [smem:[#allocation2 + $0x20]]
        %v716 = vstv %s715
        %v717 = vmul.f32 %v716, %v206
        %v718 = vstv %s714
        %v719 = vadd.f32 %v718, %v717
        %s720 = sld [smem:[#allocation2 + $0x74]]
        %s721 = sld [smem:[#allocation2 + $0x5c]]
        %v722 = vstv %s721
        %v723 = vmul.f32 %v722, %v206
        %v724 = vstv %s720
        %v725 = vadd.f32 %v724, %v723
        %s726 = sld [smem:[#allocation2 + $0x21]]
        %v727 = vstv %s726
        %v728 = vmul.f32 %v727, %v216
        %v729 = vadd.f32 %v719, %v728
        %s730 = sld [smem:[#allocation2 + $0x5d]]
        %v731 = vstv %s730
        %v732 = vmul.f32 %v731, %v216
        %v733 = vadd.f32 %v725, %v732
        %s734 = sld [smem:[#allocation2 + $0x22]]
        %v735 = vstv %s734
        %v736 = vmul.f32 %v735, %v222
        %v737 = vadd.f32 %v729, %v736
        %s738 = sld [smem:[#allocation2 + $0x5e]]
        %v739 = vstv %s738
        %v740 = vmul.f32 %v739, %v222
        %v741 = vadd.f32 %v733, %v740
        %s742 = sld [smem:[#allocation2 + $0x23]]
        %v743 = vstv %s742
        %v744 = vmul.f32 %v743, %v228
        %v745 = vadd.f32 %v737, %v744
        %s746 = sld [smem:[#allocation2 + $0x5f]]
        %v747 = vstv %s746
        %v748 = vmul.f32 %v747, %v228
        %v749 = vadd.f32 %v741, %v748
        %v750 = vmul.f32 %v745, %v749
        %v751 = vmul.f32 %v750, %v281
        %v753 = vlaneseq
        %v754 = vshrl.u32 %v753, 7
        %v755 = vsub.s32 0, %v754
        %v756 = vrot.slane %v751, %v755
        %v757 = vlaneseq
        %v758 = vshrl.u32 %v757, 7
        %v759 = vsub.s32 1, %v758
        %v760 = vrot.slane %v751, %v759
        %v763 = vsel %vm243, %v756, 0.0
        %v764 = vsel %vm243, %v760, 0.0
        %v765 = vadd.f32 %v763, %v764
        %766 = vadd.xlane.f32.xlu0 %v765
        %v767 = vpop.xlane.xlu0 %766
        %s768 = sld [smem:[#allocation2 + $0x39]]
        %s769 = sld [smem:[#allocation2 + $0x24]]
        %v770 = vstv %s769
        %v771 = vmul.f32 %v770, %v206
        %v772 = vstv %s768
        %v773 = vadd.f32 %v772, %v771
        %s774 = sld [smem:[#allocation2 + $0x75]]
        %s775 = sld [smem:[#allocation2 + $0x60]]
        %v776 = vstv %s775
        %v777 = vmul.f32 %v776, %v206
        %v778 = vstv %s774
        %v779 = vadd.f32 %v778, %v777
        %s780 = sld [smem:[#allocation2 + $0x25]]
        %v781 = vstv %s780
        %v782 = vmul.f32 %v781, %v216
        %v783 = vadd.f32 %v773, %v782
        %s784 = sld [smem:[#allocation2 + $0x61]]
        %v785 = vstv %s784
        %v786 = vmul.f32 %v785, %v216
        %v787 = vadd.f32 %v779, %v786
        %s788 = sld [smem:[#allocation2 + $0x26]]
        %v789 = vstv %s788
        %v790 = vmul.f32 %v789, %v222
        %v791 = vadd.f32 %v783, %v790
        %s792 = sld [smem:[#allocation2 + $0x62]]
        %v793 = vstv %s792
        %v794 = vmul.f32 %v793, %v222
        %v795 = vadd.f32 %v787, %v794
        %s796 = sld [smem:[#allocation2 + $0x27]]
        %v797 = vstv %s796
        %v798 = vmul.f32 %v797, %v228
        %v799 = vadd.f32 %v791, %v798
        %s800 = sld [smem:[#allocation2 + $0x63]]
        %v801 = vstv %s800
        %v802 = vmul.f32 %v801, %v228
        %v803 = vadd.f32 %v795, %v802
        %v804 = vmul.f32 %v799, %v803
        %v805 = vmul.f32 %v804, %v281
        %v807 = vlaneseq
        %v808 = vshrl.u32 %v807, 7
        %v809 = vsub.s32 0, %v808
        %v810 = vrot.slane %v805, %v809
        %v811 = vlaneseq
        %v812 = vshrl.u32 %v811, 7
        %v813 = vsub.s32 1, %v812
        %v814 = vrot.slane %v805, %v813
        %v817 = vsel %vm243, %v810, 0.0
        %v818 = vsel %vm243, %v814, 0.0
        %v819 = vadd.f32 %v817, %v818
        %820 = vadd.xlane.f32.xlu0 %v819
        %v821 = vpop.xlane.xlu0 %820
        %s822 = sld [smem:[#allocation2 + $0x3a]]
        %s823 = sld [smem:[#allocation2 + $0x28]]
        %v824 = vstv %s823
        %v825 = vmul.f32 %v824, %v206
        %v826 = vstv %s822
        %v827 = vadd.f32 %v826, %v825
        %s828 = sld [smem:[#allocation2 + $0x76]]
        %s829 = sld [smem:[#allocation2 + $0x64]]
        %v830 = vstv %s829
        %v831 = vmul.f32 %v830, %v206
        %v832 = vstv %s828
        %v833 = vadd.f32 %v832, %v831
        %s834 = sld [smem:[#allocation2 + $0x29]]
        %v835 = vstv %s834
        %v836 = vmul.f32 %v835, %v216
        %v837 = vadd.f32 %v827, %v836
        %s838 = sld [smem:[#allocation2 + $0x65]]
        %v839 = vstv %s838
        %v840 = vmul.f32 %v839, %v216
        %v841 = vadd.f32 %v833, %v840
        %s842 = sld [smem:[#allocation2 + $0x2a]]
        %v843 = vstv %s842
        %v844 = vmul.f32 %v843, %v222
        %v845 = vadd.f32 %v837, %v844
        %s846 = sld [smem:[#allocation2 + $0x66]]
        %v847 = vstv %s846
        %v848 = vmul.f32 %v847, %v222
        %v849 = vadd.f32 %v841, %v848
        %s850 = sld [smem:[#allocation2 + $0x2b]]
        %v851 = vstv %s850
        %v852 = vmul.f32 %v851, %v228
        %v853 = vadd.f32 %v845, %v852
        %s854 = sld [smem:[#allocation2 + $0x67]]
        %v855 = vstv %s854
        %v856 = vmul.f32 %v855, %v228
        %v857 = vadd.f32 %v849, %v856
        %v858 = vmul.f32 %v853, %v857
        %v859 = vmul.f32 %v858, %v281
        %v861 = vlaneseq
        %v862 = vshrl.u32 %v861, 7
        %v863 = vsub.s32 0, %v862
        %v864 = vrot.slane %v859, %v863
        %v865 = vlaneseq
        %v866 = vshrl.u32 %v865, 7
        %v867 = vsub.s32 1, %v866
        %v868 = vrot.slane %v859, %v867
        %v871 = vsel %vm243, %v864, 0.0
        %v872 = vsel %vm243, %v868, 0.0
        %v873 = vadd.f32 %v871, %v872
        %874 = vadd.xlane.f32.xlu0 %v873
        %v875 = vpop.xlane.xlu0 %874
        %s876 = sld [smem:[#allocation2 + $0x3b]]
        %s877 = sld [smem:[#allocation2 + $0x2c]]
        %v878 = vstv %s877
        %v879 = vmul.f32 %v878, %v206
        %v880 = vstv %s876
        %v881 = vadd.f32 %v880, %v879
        %s882 = sld [smem:[#allocation2 + $0x77]]
        %s883 = sld [smem:[#allocation2 + $0x68]]
        %v884 = vstv %s883
        %v885 = vmul.f32 %v884, %v206
        %v886 = vstv %s882
        %v887 = vadd.f32 %v886, %v885
        %s888 = sld [smem:[#allocation2 + $0x2d]]
        %v889 = vstv %s888
        %v890 = vmul.f32 %v889, %v216
        %v891 = vadd.f32 %v881, %v890
        %s892 = sld [smem:[#allocation2 + $0x69]]
        %v893 = vstv %s892
        %v894 = vmul.f32 %v893, %v216
        %v895 = vadd.f32 %v887, %v894
        %s896 = sld [smem:[#allocation2 + $0x2e]]
        %v897 = vstv %s896
        %v898 = vmul.f32 %v897, %v222
        %v899 = vadd.f32 %v891, %v898
        %s900 = sld [smem:[#allocation2 + $0x6a]]
        %v901 = vstv %s900
        %v902 = vmul.f32 %v901, %v222
        %v903 = vadd.f32 %v895, %v902
        %s904 = sld [smem:[#allocation2 + $0x2f]]
        %v905 = vstv %s904
        %v906 = vmul.f32 %v905, %v228
        %v907 = vadd.f32 %v899, %v906
        %s908 = sld [smem:[#allocation2 + $0x6b]]
        %v909 = vstv %s908
        %v910 = vmul.f32 %v909, %v228
        %v911 = vadd.f32 %v903, %v910
        %v912 = vmul.f32 %v907, %v911
        %v913 = vmul.f32 %v912, %v281
        %v915 = vlaneseq
        %v916 = vshrl.u32 %v915, 7
        %v917 = vsub.s32 0, %v916
        %v918 = vrot.slane %v913, %v917
        %v919 = vlaneseq
        %v920 = vshrl.u32 %v919, 7
        %v921 = vsub.s32 1, %v920
        %v922 = vrot.slane %v913, %v921
        %v925 = vsel %vm243, %v918, 0.0
        %v926 = vsel %vm243, %v922, 0.0
        %v927 = vadd.f32 %v925, %v926
        %928 = vadd.xlane.f32.xlu0 %v927
        %v929 = vpop.xlane.xlu0 %928
        %vm930 = vcmask 7168
        %v931 = vsel %vm930, %v335, %v389
        %vm932 = vcmask 15360
        %v933 = vsel %vm932, %v931, %v443
        %vm934 = vcmask 23552
        %v935 = vsel %vm934, %v933, %v497
        %vm936 = vcmask 31744
        %v937 = vsel %vm936, %v935, %v551
        %vm938 = vcmask 39936
        %v939 = vsel %vm938, %v937, %v605
        %vm940 = vcmask 48128
        %v941 = vsel %vm940, %v939, %v659
        %vm942 = vcmask 56320
        %v943 = vsel %vm942, %v941, %v713
        %vm944 = vcmask 64512
        %v945 = vsel %vm944, %v943, %v767
        %vm946 = vcmask 72704
        %v947 = vsel %vm946, %v945, %v821
        %vm948 = vcmask 80896
        %v949 = vsel %vm948, %v947, %v875
        %vm950 = vcmask 89088
        %v951 = vsel %vm950, %v949, %v929
        %v952 = vld [vmem:[%s3] sm:$0x7]
        %v953 = vld [vmem:[%s2] sm:$0xff]
        %v954 = vld [vmem:[%s2 + $0x8] sm:$0xf]
        %vm955 = vcmask 97280
        %v957 = vsel %vm955, %v951, 0
        %vm959 = vcmask 1043456
        %v961 = vsel %vm959, %v954, 0
        %963 = vmatprep.subr.mxu0 0.0
        %964 = vmatpush1.msra.mxu0 %v953
        %965 = vmatprep.subr.mxu0 0.0
        %966 = vmatpush1.msra.mxu0 %v961
        %967 = vmatprep.subr.mxu0 0.0
        %968 = vmatpush1.msra.mxu0 0.0
        %969 = vmatprep.subr.mxu0 0.0
        %970 = vmatpush1.msra.mxu0 0.0
        %971 = vmatprep.subr.mxu0 0.0
        %972 = vmatpush1.msra.mxu0 0.0
        %973 = vmatprep.subr.mxu0 0.0
        %974 = vmatpush1.msra.mxu0 0.0
        %975 = vmatprep.subr.mxu0 0.0
        %976 = vmatpush1.msra.mxu0 0.0
        %977 = vmatprep.subr.mxu0 0.0
        %978 = vmatpush1.msra.mxu0 0.0
        %979 = vmatprep.subr.mxu0 0.0
        %980 = vmatpush1.msra.mxu0 0.0
        %981 = vmatprep.subr.mxu0 0.0
        %982 = vmatpush1.msra.mxu0 0.0
        %983 = vmatprep.subr.mxu0 0.0
        %984 = vmatpush1.msra.mxu0 0.0
        %985 = vmatprep.subr.mxu0 0.0
        %986 = vmatpush1.msra.mxu0 0.0
        %987 = vmatprep.subr.mxu0 0.0
        %988 = vmatpush1.msra.mxu0 0.0
        %989 = vmatprep.subr.mxu0 0.0
        %990 = vmatpush1.msra.mxu0 0.0
        %991 = vmatprep.subr.mxu0 0.0
        %992 = vmatpush1.msra.mxu0 0.0
        %993 = vmatprep.subr.mxu0 0.0
        %994 = vmatpush1.msra.mxu0 0.0
        %995 = vmatprep.subr.mxu0 0.0
        %996 = vmatpush1.msra.mxu0 0.0
        %997 = vmatprep.subr.mxu0 0.0
        %998 = vmatpush1.msra.mxu0 0.0
        %999 = vmatprep.subr.mxu0 0.0
        %1000 = vmatpush1.msra.mxu0 0.0
        %1001 = vmatprep.subr.mxu0 0.0
        %1002 = vmatpush1.msra.mxu0 0.0
        %1003 = vmatprep.subr.mxu0 0.0
        %1004 = vmatpush1.msra.mxu0 0.0
        %1005 = vmatprep.subr.mxu0 0.0
        %1006 = vmatpush1.msra.mxu0 0.0
        %1007 = vmatprep.subr.mxu0 0.0
        %1008 = vmatpush1.msra.mxu0 0.0
        %1009 = vmatprep.subr.mxu0 0.0
        %1010 = vmatpush1.msra.mxu0 0.0
        %1011 = vmatprep.subr.mxu0 0.0
        %1012 = vmatpush1.msra.mxu0 0.0
        %1013 = vmatprep.subr.mxu0 0.0
        %1014 = vmatpush1.msra.mxu0 0.0
        %1015 = vmatprep.subr.mxu0 0.0
        %1016 = vmatpush1.msra.mxu0 0.0
        %1017 = vmatprep.subr.mxu0 0.0
        %1018 = vmatpush1.msra.mxu0 0.0
        %1019 = vmatprep.subr.mxu0 0.0
        %1020 = vmatpush1.msra.mxu0 0.0
        %1021 = vmatprep.subr.mxu0 0.0
        %1022 = vmatpush1.msra.mxu0 0.0
        %1023 = vmatprep.subr.mxu0 0.0
        %1024 = vmatpush1.msra.mxu0 0.0
        %1025 = vmatprep.subr.mxu0 0.0
        %1026 = vmatpush1.msra.mxu0 0.0
        %1027 = vmatprep.mubr.f32.mxu0 0.0
        %1028 = vmatmul.mubr.f32.gmra.mrb[0].mxu0 %v957
        %v1029 = vpop.f32.mrb[0].mxu0
        %v1030 = vadd.f32 %v952, %v1029
        %v1031 = vpop.f32.mrb[0].mxu0
        %1032 = vdwg.mxu0
        %vm1033 = vcmask 24576
        %v1034 = vsel %vm1033, %v1030, 0.0
        %1035 = vadd.xlane.f32.xlu0 %v1034
        %v1036 = vpop.xlane.xlu0 %1035
        %v1037 = vrcp.pop 4.0
        %v1038 = vmul.f32 %v1036, %v1037
        %v1039 = vsub.f32 %v1030, %v1038
        %v1040 = vmul.f32 %v1039, %v1039
        %v1041 = vsel %vm1033, %v1040, 0.0
        %1042 = vadd.xlane.f32.xlu0 %v1041
        %v1043 = vpop.xlane.xlu0 %1042
        %v1044 = vmul.f32 %v1043, %v1037
        %v1045 = vadd.f32 %v1044, 1e-05
        %v1046 = vrsqrt.pop %v1045
        %v1047 = vmul.f32 %v1039, %v1046
        %v1049 = vrot.slane %v952, 1
        %v1051 = vmul.f32 %v1047, %v1049
        %v1052 = vrot.slane %v952, 2
        %v1054 = vadd.f32 %v1051, %v1052
        %v1055 = vmax.f32 %v1054, 0.0
        %v1056 = vsub.f32 0.0, %v1055
        %v1057 = vmul.f32 %v1056, 1.442695
        %v1058 = vpow.pop %v1057
        %v1059 = vadd.f32 %v1058, 1.0
        %v1060 = vrcp.pop %v1059
        %v1061 = vlaneseq
        %v1062 = vshrl.u32 %v1061, 7
        %v1063 = vsub.s32 0, %v1062
        %v1064 = vrot.slane %v206, %v1063
        %v1065 = vlaneseq
        %v1066 = vshrl.u32 %v1065, 7
        %v1067 = vsub.s32 1, %v1066
        %v1068 = vrot.slane %v206, %v1067
        %v1071 = vsel %vm243, %v1064, 0.0
        %v1072 = vsel %vm243, %v1068, 0.0
        %v1073 = vadd.f32 %v1071, %v1072
        %1074 = vadd.xlane.f32.xlu0 %v1073
        %v1075 = vpop.xlane.xlu0 %1074
        %v1076 = vrcp.pop 256.0
        %v1077 = vmul.f32 %v1075, %v1076
        %v1078 = vlaneseq
        %v1079 = vshrl.u32 %v1078, 7
        %v1080 = vsub.s32 2, %v1079
        %v1081 = vrot.slane %v206, %v1080
        %v1082 = vlaneseq
        %v1083 = vshrl.u32 %v1082, 7
        %v1084 = vsub.s32 3, %v1083
        %v1085 = vrot.slane %v206, %v1084
        %v1088 = vsel %vm243, %v1081, 0.0
        %v1089 = vsel %vm243, %v1085, 0.0
        %v1090 = vadd.f32 %v1088, %v1089
        %1091 = vadd.xlane.f32.xlu0 %v1090
        %v1092 = vpop.xlane.xlu0 %1091
        %v1093 = vmul.f32 %v1092, %v1076
        %v1094 = vlaneseq
        %v1095 = vshrl.u32 %v1094, 7
        %v1096 = vsub.s32 4, %v1095
        %v1097 = vrot.slane %v206, %v1096
        %v1098 = vlaneseq
        %v1099 = vshrl.u32 %v1098, 7
        %v1100 = vsub.s32 5, %v1099
        %v1101 = vrot.slane %v206, %v1100
        %v1104 = vsel %vm243, %v1097, 0.0
        %v1105 = vsel %vm243, %v1101, 0.0
        %v1106 = vadd.f32 %v1104, %v1105
        %1107 = vadd.xlane.f32.xlu0 %v1106
        %v1108 = vpop.xlane.xlu0 %1107
        %v1109 = vmul.f32 %v1108, %v1076
        %v1110 = vlaneseq
        %v1111 = vshrl.u32 %v1110, 7
        %v1112 = vsub.s32 6, %v1111
        %v1113 = vrot.slane %v206, %v1112
        %v1114 = vlaneseq
        %v1115 = vshrl.u32 %v1114, 7
        %v1116 = vsub.s32 7, %v1115
        %v1117 = vrot.slane %v206, %v1116
        %v1120 = vsel %vm243, %v1113, 0.0
        %v1121 = vsel %vm243, %v1117, 0.0
        %v1122 = vadd.f32 %v1120, %v1121
        %1123 = vadd.xlane.f32.xlu0 %v1122
        %v1124 = vpop.xlane.xlu0 %1123
        %v1125 = vmul.f32 %v1124, %v1076
        %v1126 = vsel %vm930, %v1077, %v1093
        %v1127 = vsel %vm932, %v1126, %v1109
        %v1128 = vsel %vm934, %v1127, %v1125
        %v1129 = vmul.f32 %v1060, %v1128
        %1130 = vst.msk [vmem:[%s201] sm:$0x1] %vm1033, %v1129
        %s1131 = sand.u32 %s116, 1
        %s1132 = scalar_lea.sflag [#allocation3], %s1131
        %s1133 = sand.u32 %s116, 1
        %s1134 = scalar_lea.vmem [#allocation5], %s1133
        // Predicated region
        $region41: #{tpu_custom_call.1} parent=35 // pred_check
          %p1135 = pneg %p126
        $region42: #{tpu_custom_call.1} parent=35 // pred_check_branch
          %1137 = sbr.rel (%p1135) target = $region44
        $region43: #{tpu_custom_call.1} parent=35 // pred_region
          %s1139 = ssub.s32 16, 16
          %1140 = vsyncadd %s1132, %s1139
          %s1141 = smul.addr %s19, 16
          %s1142 = scalar_lea.hbm %s4, %s1141
          %s1144 = sshll.u32 %s1134, 4
          %s1145 = int_to_ptr.vmem [resolvable:$true] %s1144
          %1147 = dma.vmem_to_hbm [thread:$0]  %s1145, 16, %s1142, %s1132
        $region44: #{tpu_custom_call.1} parent=35 // pred_fallthru
          _
      $region36: #{tpu_custom_call.1} parent=5 // pred_fallthru
        _
      %p1148 = scmp.le.s32.totalorder 2, %s14
      // Predicated region
      $region45: #{tpu_custom_call.1} parent=5 // pred_check
        %p1149 = pneg %p1148
      $region46: #{tpu_custom_call.1} parent=5 // pred_check_branch
        %1151 = sbr.rel (%p1149) target = $region48
      $region47: #{tpu_custom_call.1} parent=5 // pred_region
        %s1152 = ssub.s32 %s14, 2
        // Predicated region
        $region49: #{tpu_custom_call.1} parent=47 // pred_check
          %p1153 = pneg %p132
        $region50: #{tpu_custom_call.1} parent=47 // pred_check_branch
          %1155 = sbr.rel (%p1153) target = $region52
        $region51: #{tpu_custom_call.1} parent=47 // pred_region
          %s1156 = sand.u32 %s117, 1
          %s1157 = scalar_lea.sflag [#allocation3], %s1156
          %s1158 = sand.u32 %s117, 1
          %s1159 = scalar_lea.vmem [#allocation5], %s1158
          %1160 = dma.done %s1157, 16
        $region52: #{tpu_custom_call.1} parent=47 // pred_fallthru
          _
      $region48: #{tpu_custom_call.1} parent=5 // pred_fallthru
        _
    $region6: #{tpu_custom_call.1} parent=1 // loop_footer
      %s18 = sadd.s32 1, %s14
    $region7: #{tpu_custom_call.1} parent=1 // loop_footer_branch
      %13 = sbr.rel target = $region3
    $region8: #{tpu_custom_call.1} parent=1 // loop_exit
      _
    %1161 = vsyncpa [#allocation3], 1
    %s1162 = scalar_lea.sflag [#allocation3], 1
    %1163 = vsyncpa %s1162, 1
    %1164 = vsyncpa [#allocation4], 1
    %s1165 = scalar_lea.sflag [#allocation4], 1
    %1166 = vsyncpa %s1165, 1

</llo_original>
